<compile_context>
chip_gen: v5e
topology: v5e:2x2
jax: 0.10.0
libtpu: 0.0.40
codegen_flags: <defaults>
</compile_context>

<pallas_src>
import jax
import jax.numpy as jnp
from jax import lax
from jax.experimental import pallas as pl
from jax.experimental.pallas import tpu as pltpu


# ----------------------------------------------------------------------------
# Fused kernel: conv -> ReLU -> conv (shared weights) -> + identity -> ReLU
# ----------------------------------------------------------------------------
def _make_resnet_block_kernel(H, W, C, K, pad_lo, pad_hi):
    WC = W * C

    def kernel(x_ref, wb_ref, b_ref, o_ref, pad_ref):
        # x_ref  : (1, H, WC)    input image, lane-dense (w, c)-packed rows
        # wb_ref : (K, WC, WC)   bf16 banded row-tap weights (kx & cin folded in)
        # b_ref  : (1, WC)       f32 bias tiled over w
        # o_ref  : (1, H, WC)    output block
        # pad_ref: (H+K-1, WC)   f32 scratch: row-padded activation
        x = x_ref[0].astype(jnp.float32)                         # (H, WC)

        # Zero ONLY the top / bottom padding rows.  The interior is always
        # fully overwritten before being read and the border never becomes
        # nonzero, so this is ~2 rows of stores instead of the whole slab.
        # (Done every step so it is correct per-TensorCore on v7x megacore.)
        if pad_lo > 0:
            pad_ref[pl.ds(0, pad_lo), :] = jnp.zeros((pad_lo, WC), jnp.float32)
        if pad_hi > 0:
            pad_ref[pl.ds(pad_lo + H, pad_hi), :] = jnp.zeros(
                (pad_hi, WC), jnp.float32)

        def conv_same(v):
            # v: (H, WC) f32 activation.  Write the interior rows once, then
            # one MXU matmul per ky row-tap, accumulated in f32 registers.
            pad_ref[pl.ds(pad_lo, H), :] = v
            acc = None
            for ky in range(K):                       # static, K is tiny
                lhs = pad_ref[pl.ds(ky, H), :].astype(jnp.bfloat16)   # (H, WC)
                part = jnp.dot(lhs, wb_ref[ky],
                               preferred_element_type=jnp.float32)    # (H, WC)
                acc = part if acc is None else acc + part
            return acc + b_ref[...]                    # bias broadcast over rows

        # conv1 -> ReLU   (intermediate stays in VMEM / registers)
        y = jnp.maximum(conv_same(x), 0.0)
        # conv2 (same weights & bias) -> + identity -> ReLU
        out = jnp.maximum(conv_same(y) + x, 0.0)
        o_ref[0] = out.astype(o_ref.dtype)

    return kernel


# ----------------------------------------------------------------------------
# Banded weight construction:  B[ky, wi*C+ci, wo*C+co] = w[ky, kx, ci, co]
# whenever wi == wo + kx - pad_lo (taps that fall in the zero padding are
# simply dropped, which realizes 'same' horizontal padding for free).
# ----------------------------------------------------------------------------
def _banded_weights(weight_oihw, W, pad_lo):
    Cout, Cin, K, _ = weight_oihw.shape
    w_kkio = jnp.transpose(weight_oihw, (2, 3, 1, 0)).astype(jnp.float32)
    mats = []
    for ky in range(K):
        b = jnp.zeros((W * Cin, W * Cout), jnp.float32)
        for kx in range(K):
            # S[wi, wo] = 1 iff wi == wo + (kx - pad_lo)
            shift = jnp.eye(W, W, k=-(kx - pad_lo), dtype=jnp.float32)
            b = b + jnp.kron(shift, w_kkio[ky, kx])
        mats.append(b)
    return jnp.stack(mats).astype(jnp.bfloat16)        # (K, W*C, W*C)


# ----------------------------------------------------------------------------
# Wrapper: NCHW / OIHW (PyTorch layout) in, NCHW out.
# ----------------------------------------------------------------------------
def resnet_block_forward(x_nchw, weight_oihw, bias):
    """x: (N, C, H, W); weight: (C, C, K, K) OIHW; bias: (C,)."""
    N, C, H, W = x_nchw.shape
    K = weight_oihw.shape[-1]
    # PyTorch padding='same' (stride 1): pad_lo = (K-1)//2, pad_hi = K-1-pad_lo
    pad_lo = (K - 1) // 2
    pad_hi = (K - 1) - pad_lo
    WC = W * C

    # Lane-dense packing for the kernel: (N, C, H, W) -> (N, H, W*C).
    x = jnp.transpose(x_nchw, (0, 2, 3, 1)).reshape(N, H, WC)
    wb = _banded_weights(weight_oihw, W, pad_lo)               # (K, WC, WC) bf16
    b_row = jnp.tile(bias.astype(jnp.float32), W).reshape(1, WC)

    kernel = _make_resnet_block_kernel(H, W, C, K, pad_lo, pad_hi)
    out = pl.pallas_call(
        kernel,
        out_shape=jax.ShapeDtypeStruct((N, H, WC), x_nchw.dtype),
        grid=(N,),
        in_specs=[
            pl.BlockSpec((1, H, WC), lambda n: (n, 0, 0)),
            pl.BlockSpec((K, WC, WC), lambda n: (0, 0, 0)),
            pl.BlockSpec((1, WC), lambda n: (0, 0)),
        ],
        out_specs=pl.BlockSpec((1, H, WC), lambda n: (n, 0, 0)),
        scratch_shapes=[pltpu.VMEM((H + K - 1, WC), jnp.float32)],
        compiler_params=pltpu.CompilerParams(
            dimension_semantics=("parallel",)),
    )(x, wb, b_row)

    return jnp.transpose(out.reshape(N, H, W, C), (0, 3, 1, 2))   # back to NCHW


# ----------------------------------------------------------------------------
# Pure-JAX reference (f32 lax.conv) for the correctness check.
# ----------------------------------------------------------------------------
def resnet_block_reference(x_nchw, weight_oihw, bias):
    N, C, H, W = x_nchw.shape
    K = weight_oihw.shape[-1]
    pad_lo = (K - 1) // 2
    pad_hi = (K - 1) - pad_lo

    x = jnp.transpose(x_nchw, (0, 2, 3, 1))
    w = jnp.transpose(weight_oihw, (2, 3, 1, 0))

    def conv(v):
        y = lax.conv_general_dilated(
            v, w, window_strides=(1, 1),
            padding=((pad_lo, pad_hi), (pad_lo, pad_hi)),
            dimension_numbers=("NHWC", "HWIO", "NHWC"),
        )
        return y + bias[None, None, None, :]

    y = jnp.maximum(conv(x), 0.0)
    y = jnp.maximum(conv(y) + x, 0.0)
    return jnp.transpose(y, (0, 3, 1, 2))


if __name__ == "__main__":
    key = jax.random.PRNGKey(0)
    kx, kw, kb = jax.random.split(key, 3)

    # Small shapes consistent with the module: in_feature=16, k_size=3.
    N, C, H, W, K = 2, 16, 16, 16, 3
    x = jax.random.normal(kx, (N, C, H, W), jnp.float32)
    scale = 1.0 / jnp.sqrt(jnp.float32(C * K * K))
    weight = jax.random.normal(kw, (C, C, K, K), jnp.float32) * scale
    bias = jax.random.normal(kb, (C,), jnp.float32) * 0.01

    fwd = jax.jit(resnet_block_forward)
    out = jax.block_until_ready(fwd(x, weight, bias))
    assert out.shape == (N, C, H, W), out.shape

    ref = jax.block_until_ready(resnet_block_reference(x, weight, bias))
    # Tolerance relaxed vs. 1e-4 because the MXU operands are bf16 (f32 accum),
    # per the performance review.
    if not jnp.allclose(out, ref, atol=5e-2, rtol=5e-2):
        err = float(jnp.max(jnp.abs(out - ref)))
        raise AssertionError(
            f"Pallas output mismatch vs pure-JAX reference (max err {err})")

    print("KERNEL_OK")
</pallas_src>

<mosaic_0001>
module attributes {stable_mosaic.version = 11 : i64} {
  func.func @kernel(%arg0: i32, %arg1: memref<1x16x256xf32, #tpu.memory_space<vmem>>, %arg2: memref<3x256x256xbf16, #tpu.memory_space<vmem>>, %arg3: memref<1x256xf32, #tpu.memory_space<vmem>>, %arg4: memref<1x16x256xf32, #tpu.memory_space<vmem>>, %arg5: memref<18x256xf32, #tpu.memory_space<vmem>>) attributes {dimension_semantics = [#tpu.dimension_semantics<parallel>], iteration_bounds = array<i64: 2>, scalar_prefetch = 0 : i64, scratch_operands = 1 : i64, tpu.core_type = #tpu.core_type<tc>, window_params = [{transform_indices = @transform_0, window_bounds = array<i64: 1, 16, 256>}, {pipeline_mode = #tpu.pipeline_mode<synchronous>, transform_indices = @transform_1, window_bounds = array<i64: 3, 256, 256>}, {pipeline_mode = #tpu.pipeline_mode<synchronous>, transform_indices = @transform_2, window_bounds = array<i64: 1, 256>}, {transform_indices = @transform_3, window_bounds = array<i64: 1, 16, 256>}]} {
    %c0 = arith.constant 0 : index
    %c0_0 = arith.constant 0 : index
    %c0_1 = arith.constant 0 : index
    %0 = vector.load %arg1[%c0, %c0_0, %c0_1] : memref<1x16x256xf32, #tpu.memory_space<vmem>>, vector<1x16x256xf32>
    %1 = vector.shape_cast %0 : vector<1x16x256xf32> to vector<16x256xf32>
    %cst = arith.constant 0.000000e+00 : f32
    %2 = vector.broadcast %cst : f32 to vector<1x256xf32>
    %c0_2 = arith.constant 0 : index
    %c0_3 = arith.constant 0 : index
    %3 = vector.load %arg5[%c0_2, %c0_3] : memref<18x256xf32, #tpu.memory_space<vmem>>, vector<1x256xf32>
    tpu.vector_store %arg5[%c0_2, %c0_3], %2 {strides = array<i32>} : memref<18x256xf32, #tpu.memory_space<vmem>>, vector<1x256xf32>,
    %cst_4 = arith.constant 0.000000e+00 : f32
    %4 = vector.broadcast %cst_4 : f32 to vector<1x256xf32>
    %c17 = arith.constant 17 : index
    %c0_5 = arith.constant 0 : index
    %5 = vector.load %arg5[%c17, %c0_5] : memref<18x256xf32, #tpu.memory_space<vmem>>, vector<1x256xf32>
    tpu.vector_store %arg5[%c17, %c0_5], %4 {strides = array<i32>} : memref<18x256xf32, #tpu.memory_space<vmem>>, vector<1x256xf32>,
    %c1 = arith.constant 1 : index
    %c0_6 = arith.constant 0 : index
    %6 = vector.load %arg5[%c1, %c0_6] : memref<18x256xf32, #tpu.memory_space<vmem>>, vector<16x256xf32>
    tpu.vector_store %arg5[%c1, %c0_6], %1 {strides = array<i32>} : memref<18x256xf32, #tpu.memory_space<vmem>>, vector<16x256xf32>,
    %c0_7 = arith.constant 0 : index
    %c0_8 = arith.constant 0 : index
    %7 = vector.load %arg5[%c0_7, %c0_8] : memref<18x256xf32, #tpu.memory_space<vmem>>, vector<16x256xf32>
    %8 = arith.truncf %7 : vector<16x256xf32> to vector<16x256xbf16>
    %c0_9 = arith.constant 0 : index
    %c0_10 = arith.constant 0 : index
    %c0_11 = arith.constant 0 : index
    %9 = vector.load %arg2[%c0_9, %c0_10, %c0_11] : memref<3x256x256xbf16, #tpu.memory_space<vmem>>, vector<1x256x256xbf16>
    %10 = vector.shape_cast %9 : vector<1x256x256xbf16> to vector<256x256xbf16>
    %cst_12 = arith.constant dense<0.000000e+00> : vector<16x256xf32>
    %11 = tpu.matmul %8, %10, %cst_12 {dimension_numbers = #tpu.dot_dimension_numbers<[1], [0], [0], [1], [0, 0, 1, 1], [], []>} : vector<16x256xbf16>, vector<256x256xbf16>, vector<16x256xf32> -> vector<16x256xf32>
    %c1_13 = arith.constant 1 : index
    %c0_14 = arith.constant 0 : index
    %12 = vector.load %arg5[%c1_13, %c0_14] : memref<18x256xf32, #tpu.memory_space<vmem>>, vector<16x256xf32>
    %13 = arith.truncf %12 : vector<16x256xf32> to vector<16x256xbf16>
    %c1_15 = arith.constant 1 : index
    %c0_16 = arith.constant 0 : index
    %c0_17 = arith.constant 0 : index
    %14 = vector.load %arg2[%c1_15, %c0_16, %c0_17] : memref<3x256x256xbf16, #tpu.memory_space<vmem>>, vector<1x256x256xbf16>
    %15 = vector.shape_cast %14 : vector<1x256x256xbf16> to vector<256x256xbf16>
    %cst_18 = arith.constant dense<0.000000e+00> : vector<16x256xf32>
    %16 = tpu.matmul %13, %15, %cst_18 {dimension_numbers = #tpu.dot_dimension_numbers<[1], [0], [0], [1], [0, 0, 1, 1], [], []>} : vector<16x256xbf16>, vector<256x256xbf16>, vector<16x256xf32> -> vector<16x256xf32>
    %17 = arith.addf %11, %16 : vector<16x256xf32>
    %c2 = arith.constant 2 : index
    %c0_19 = arith.constant 0 : index
    %18 = vector.load %arg5[%c2, %c0_19] : memref<18x256xf32, #tpu.memory_space<vmem>>, vector<16x256xf32>
    %19 = arith.truncf %18 : vector<16x256xf32> to vector<16x256xbf16>
    %c2_20 = arith.constant 2 : index
    %c0_21 = arith.constant 0 : index
    %c0_22 = arith.constant 0 : index
    %20 = vector.load %arg2[%c2_20, %c0_21, %c0_22] : memref<3x256x256xbf16, #tpu.memory_space<vmem>>, vector<1x256x256xbf16>
    %21 = vector.shape_cast %20 : vector<1x256x256xbf16> to vector<256x256xbf16>
    %cst_23 = arith.constant dense<0.000000e+00> : vector<16x256xf32>
    %22 = tpu.matmul %19, %21, %cst_23 {dimension_numbers = #tpu.dot_dimension_numbers<[1], [0], [0], [1], [0, 0, 1, 1], [], []>} : vector<16x256xbf16>, vector<256x256xbf16>, vector<16x256xf32> -> vector<16x256xf32>
    %23 = arith.addf %17, %22 : vector<16x256xf32>
    %c0_24 = arith.constant 0 : index
    %c0_25 = arith.constant 0 : index
    %24 = vector.load %arg3[%c0_24, %c0_25] : memref<1x256xf32, #tpu.memory_space<vmem>>, vector<1x256xf32>
    %25 = vector.broadcast %24 : vector<1x256xf32> to vector<16x256xf32>
    %26 = arith.addf %23, %25 : vector<16x256xf32>
    %cst_26 = arith.constant 0.000000e+00 : f32
    %27 = vector.broadcast %cst_26 : f32 to vector<16x256xf32>
    %28 = arith.maximumf %26, %27 : vector<16x256xf32>
    %c1_27 = arith.constant 1 : index
    %c0_28 = arith.constant 0 : index
    %29 = vector.load %arg5[%c1_27, %c0_28] : memref<18x256xf32, #tpu.memory_space<vmem>>, vector<16x256xf32>
    tpu.vector_store %arg5[%c1_27, %c0_28], %28 {strides = array<i32>} : memref<18x256xf32, #tpu.memory_space<vmem>>, vector<16x256xf32>,
    %c0_29 = arith.constant 0 : index
    %c0_30 = arith.constant 0 : index
    %30 = vector.load %arg5[%c0_29, %c0_30] : memref<18x256xf32, #tpu.memory_space<vmem>>, vector<16x256xf32>
    %31 = arith.truncf %30 : vector<16x256xf32> to vector<16x256xbf16>
    %c0_31 = arith.constant 0 : index
    %c0_32 = arith.constant 0 : index
    %c0_33 = arith.constant 0 : index
    %32 = vector.load %arg2[%c0_31, %c0_32, %c0_33] : memref<3x256x256xbf16, #tpu.memory_space<vmem>>, vector<1x256x256xbf16>
    %33 = vector.shape_cast %32 : vector<1x256x256xbf16> to vector<256x256xbf16>
    %cst_34 = arith.constant dense<0.000000e+00> : vector<16x256xf32>
    %34 = tpu.matmul %31, %33, %cst_34 {dimension_numbers = #tpu.dot_dimension_numbers<[1], [0], [0], [1], [0, 0, 1, 1], [], []>} : vector<16x256xbf16>, vector<256x256xbf16>, vector<16x256xf32> -> vector<16x256xf32>
    %c1_35 = arith.constant 1 : index
    %c0_36 = arith.constant 0 : index
    %35 = vector.load %arg5[%c1_35, %c0_36] : memref<18x256xf32, #tpu.memory_space<vmem>>, vector<16x256xf32>
    %36 = arith.truncf %35 : vector<16x256xf32> to vector<16x256xbf16>
    %c1_37 = arith.constant 1 : index
    %c0_38 = arith.constant 0 : index
    %c0_39 = arith.constant 0 : index
    %37 = vector.load %arg2[%c1_37, %c0_38, %c0_39] : memref<3x256x256xbf16, #tpu.memory_space<vmem>>, vector<1x256x256xbf16>
    %38 = vector.shape_cast %37 : vector<1x256x256xbf16> to vector<256x256xbf16>
    %cst_40 = arith.constant dense<0.000000e+00> : vector<16x256xf32>
    %39 = tpu.matmul %36, %38, %cst_40 {dimension_numbers = #tpu.dot_dimension_numbers<[1], [0], [0], [1], [0, 0, 1, 1], [], []>} : vector<16x256xbf16>, vector<256x256xbf16>, vector<16x256xf32> -> vector<16x256xf32>
    %40 = arith.addf %34, %39 : vector<16x256xf32>
    %c2_41 = arith.constant 2 : index
    %c0_42 = arith.constant 0 : index
    %41 = vector.load %arg5[%c2_41, %c0_42] : memref<18x256xf32, #tpu.memory_space<vmem>>, vector<16x256xf32>
    %42 = arith.truncf %41 : vector<16x256xf32> to vector<16x256xbf16>
    %c2_43 = arith.constant 2 : index
    %c0_44 = arith.constant 0 : index
    %c0_45 = arith.constant 0 : index
    %43 = vector.load %arg2[%c2_43, %c0_44, %c0_45] : memref<3x256x256xbf16, #tpu.memory_space<vmem>>, vector<1x256x256xbf16>
    %44 = vector.shape_cast %43 : vector<1x256x256xbf16> to vector<256x256xbf16>
    %cst_46 = arith.constant dense<0.000000e+00> : vector<16x256xf32>
    %45 = tpu.matmul %42, %44, %cst_46 {dimension_numbers = #tpu.dot_dimension_numbers<[1], [0], [0], [1], [0, 0, 1, 1], [], []>} : vector<16x256xbf16>, vector<256x256xbf16>, vector<16x256xf32> -> vector<16x256xf32>
    %46 = arith.addf %40, %45 : vector<16x256xf32>
    %c0_47 = arith.constant 0 : index
    %c0_48 = arith.constant 0 : index
    %47 = vector.load %arg3[%c0_47, %c0_48] : memref<1x256xf32, #tpu.memory_space<vmem>>, vector<1x256xf32>
    %48 = vector.broadcast %47 : vector<1x256xf32> to vector<16x256xf32>
    %49 = arith.addf %46, %48 : vector<16x256xf32>
    %50 = arith.addf %49, %1 : vector<16x256xf32>
    %cst_49 = arith.constant 0.000000e+00 : f32
    %51 = vector.broadcast %cst_49 : f32 to vector<16x256xf32>
    %52 = arith.maximumf %50, %51 : vector<16x256xf32>
    %c0_50 = arith.constant 0 : index
    %c0_51 = arith.constant 0 : index
    %c0_52 = arith.constant 0 : index
    %53 = vector.load %arg4[%c0_50, %c0_51, %c0_52] : memref<1x16x256xf32, #tpu.memory_space<vmem>>, vector<1x16x256xf32>
    %54 = vector.shape_cast %53 : vector<1x16x256xf32> to vector<16x256xf32>
    %55 = vector.shape_cast %52 : vector<16x256xf32> to vector<1x16x256xf32>
    tpu.vector_store %arg4[%c0_50, %c0_51, %c0_52], %55 {strides = array<i32>} : memref<1x16x256xf32, #tpu.memory_space<vmem>>, vector<1x16x256xf32>,
    return
  }
  func.func @transform_0(%arg0: i32) -> (i32, i32, i32) {
    %c0_i32 = arith.constant 0 : i32
    %c0_i32_0 = arith.constant 0 : i32
    %c0_i32_1 = arith.constant 0 : i32
    return %arg0, %c0_i32, %c0_i32_0 : i32, i32, i32
  }
  func.func @transform_1(%arg0: i32) -> (i32, i32, i32) {
    %c0_i32 = arith.constant 0 : i32
    %c0_i32_0 = arith.constant 0 : i32
    %c0_i32_1 = arith.constant 0 : i32
    %c0_i32_2 = arith.constant 0 : i32
    return %c0_i32, %c0_i32_0, %c0_i32_1 : i32, i32, i32
  }
  func.func @transform_2(%arg0: i32) -> (i32, i32) {
    %c0_i32 = arith.constant 0 : i32
    %c0_i32_0 = arith.constant 0 : i32
    %c0_i32_1 = arith.constant 0 : i32
    return %c0_i32, %c0_i32_0 : i32, i32
  }
  func.func @transform_3(%arg0: i32) -> (i32, i32, i32) {
    %c0_i32 = arith.constant 0 : i32
    %c0_i32_0 = arith.constant 0 : i32
    %c0_i32_1 = arith.constant 0 : i32
    return %arg0, %c0_i32, %c0_i32_0 : i32, i32, i32
  }
}

</mosaic_0001>

<llo_original>
// kernel: tile.8
$region0: #{tile.8}
  #allocation0 [shape = 's32[1]{0}', space=sflag, size = 0x4, scoped, tag = 'scoped memory for tile.8']
  %s0 = inlined_call_operand.vmem [shape: f32[16], index: 0, kind: input, shape index: {}]
  %s1 = inlined_call_operand.vmem [shape: f32[16,16], index: 1, kind: output, shape index: {}]
  // Predicated region
  $region2: #{tile.8} parent=0 // pred_check
    _
  $region3: #{tile.8} parent=0 // pred_check_branch
    %3 = sbr.rel (0) target = $region5
  $region4: #{tile.8} parent=0 // pred_region
    _
  $region5: #{tile.8} parent=0 // pred_fallthru
    _
  %v4 = vld [vmem:[%s0] ss:$0 sm:$0xff]
  %5 = vst [vmem:[%s1] sm:$0xff] %v4
  %s6 = scalar_lea.vmem %s1, 8
  %7 = vst [vmem:[%s6] sm:$0xff] %v4

// kernel: tile.9
$region0: #{tile.9}
  %s0 = inlined_call_operand.vmem [shape: f32[16,16], index: 0, kind: input, shape index: {}]
  %s1 = inlined_call_operand.vmem [shape: f32[1,256], index: 1, kind: output, shape index: {}]
  $region1: #{tile.9} parent=0
    #allocation0 [shape = 'u8[8192]{0}', space=vmem, size = 0x2000, scoped, tag = 'scoped mem for output reshape']
    %s2 = smov 3
    %v3 = vld [vmem:[%s0] ss:$8 sm:%s2]
    %vm4 = vcmask 130048
    %5 = vst.msk [vmem:[#allocation0] ss:$8 sm:$0x3] %vm4, %v3
    %s6 = scalar_lea.vmem %s0, 7
    %s7 = smov 3
    %v8 = vld [vmem:[%s6] ss:$8 sm:%s7]
    %9 = vrot.lane.b32.xlu0 %v8, 112
    %v10 = vpop.permute.xlu0 %9
    %vm11 = vcmask 1048448
    %12 = vst.msk [vmem:[#allocation0] ss:$8 sm:$0x3] %vm11, %v10
    %s13 = scalar_lea.vmem %s0, 6
    %s14 = smov 3
    %v15 = vld [vmem:[%s13] ss:$8 sm:%s14]
    %16 = vrot.lane.b32.xlu0 %v15, 96
    %v17 = vpop.permute.xlu0 %16
    %vm18 = vcmask 917248
    %19 = vst.msk [vmem:[#allocation0] ss:$8 sm:$0x3] %vm18, %v17
    %s20 = scalar_lea.vmem %s0, 5
    %s21 = smov 3
    %v22 = vld [vmem:[%s20] ss:$8 sm:%s21]
    %23 = vrot.lane.b32.xlu0 %v22, 80
    %v24 = vpop.permute.xlu0 %23
    %vm25 = vcmask 786048
    %26 = vst.msk [vmem:[#allocation0] ss:$8 sm:$0x3] %vm25, %v24
    %s27 = scalar_lea.vmem %s0, 4
    %s28 = smov 3
    %v29 = vld [vmem:[%s27] ss:$8 sm:%s28]
    %30 = vrot.lane.b32.xlu0 %v29, 64
    %v31 = vpop.permute.xlu0 %30
    %vm32 = vcmask 654848
    %33 = vst.msk [vmem:[#allocation0] ss:$8 sm:$0x3] %vm32, %v31
    %s34 = scalar_lea.vmem %s0, 3
    %s35 = smov 3
    %v36 = vld [vmem:[%s34] ss:$8 sm:%s35]
    %37 = vrot.lane.b32.xlu0 %v36, 48
    %v38 = vpop.permute.xlu0 %37
    %vm39 = vcmask 523648
    %40 = vst.msk [vmem:[#allocation0] ss:$8 sm:$0x3] %vm39, %v38
    %s41 = scalar_lea.vmem %s0, 2
    %s42 = smov 3
    %v43 = vld [vmem:[%s41] ss:$8 sm:%s42]
    %44 = vrot.lane.b32.xlu0 %v43, 32
    %v45 = vpop.permute.xlu0 %44
    %vm46 = vcmask 392448
    %47 = vst.msk [vmem:[#allocation0] ss:$8 sm:$0x3] %vm46, %v45
    %s48 = scalar_lea.vmem %s0, 1
    %s49 = smov 3
    %v50 = vld [vmem:[%s48] ss:$8 sm:%s49]
    %51 = vrot.lane.b32.xlu0 %v50, 16
    %v52 = vpop.permute.xlu0 %51
    %vm53 = vcmask 261248
    %54 = vst.msk [vmem:[#allocation0] ss:$8 sm:$0x3] %vm53, %v52
    %s56 = ssub.s32 2, 1
    %v57 = vld [vmem:[#allocation0] sm:%s56]
    %s59 = ssub.s32 2, 1
    %60 = vst [vmem:[%s1] sm:%s59] %v57
    %s61 = scalar_lea.vmem [#allocation0], 8
    %v62 = vld [vmem:[%s61] sm:%s56]
    %s64 = ssub.s32 2, 1
    %s65 = scalar_lea.vmem %s1, 1
    %66 = vst [vmem:[%s65] sm:%s64] %v62

// kernel: resnet_block_forward.1
$region0: #{resnet_block_forward.1}
  #allocation0 [shape = 'u32[]', space=smem, size = 0x4, offset = 0x4, fixed_abs, tag = 'smem constant byte address 0x4 - core index']
  #allocation1 [shape = 'u32[72,128]{1,0:T(1,128)}', space=vmem, size = 0x9000, scoped, tag = 'internal scratch']
  #allocation2 [shape = 'f32[18,256]{1,0:T(8,128)}', space=vmem, size = 0x6000, scoped, tag = 'scratch operand']
  %s0 = inlined_call_operand.vmem [shape: f32[2,16,256], index: 0, kind: input, shape index: {}]
  %s1 = inlined_call_operand.vmem [shape: bf16[3,256,256], index: 1, kind: input, shape index: {}]
  %s2 = inlined_call_operand.vmem [shape: f32[1,256], index: 2, kind: input, shape index: {}]
  %s3 = inlined_call_operand.vmem [shape: f32[2,16,256], index: 3, kind: output, shape index: {}]
  %s4 = sld [smem:[#allocation0]]
  $region45: #{resnet_block_forward.1} parent=0
    _
  %s6 = ssub.s32 1, %s4
  %s7 = scalar_select 0, %s6, %s4
  loop: start=0, step=1, limit=4
  $region2: #{resnet_block_forward.1} parent=0 // loop_pre_header
    _
  $region3: #{resnet_block_forward.1} parent=0 // loop_header
    %s9 = sphi 0, %s13
    %p10 = scmp.ge.s32.totalorder %s9, 4
    %s19 = sphi 0, %s21
    %s22 = sphi 0, %s19
    %s23 = sphi 0, %s22
    %s39 = sphi 0, %s23
    %s43 = sphi 0, %s43
    %s45 = sphi 0, %s43
    %s46 = sphi 0, %s45
    %s60 = sphi 0, %s46
    %s64 = sphi 0, %s64
    %s66 = sphi 0, %s64
    %s67 = sphi 0, %s66
    %s81 = sphi 0, %s67
    %s87 = sphi 0, %s89
    %s90 = sphi 0, %s87
    %s91 = sphi 0, %s90
    %s107 = sphi 0, %s91
  $region4: #{resnet_block_forward.1} parent=0 // loop_header_branch
    %12 = sbr.rel (%p10) target = $region8
  $region5: #{resnet_block_forward.1} parent=0 // loop_body
    %s14 = ssub.s32 %s9, 1
    %s15 = ssub.s32 %s9, 2
    %s16 = sadd.s32 %s9, 1
    %s17 = ssub.s32 %s9, %s16
    %p18 = scmp.eq.s32.totalorder %s17, 0
    %s20 = sadd.s32 %s19, 1
    %s21 = scalar_select %p18, %s19, %s20
    %p24 = pneg %p18
    %p25 = scmp.eq.s32.totalorder %s9, 1
    %p26 = por %p24, %p25
    %p27 = scmp.ne.s32.totalorder %s19, %s22
    %p28 = scmp.eq.s32.totalorder %s9, 0
    %p29 = por %p27, %p28
    %p30 = scmp.ne.s32.totalorder %s19, %s22
    %p31 = scmp.eq.s32.totalorder %s14, 1
    %p32 = por %p30, %p31
    %p33 = scmp.ne.s32.totalorder %s22, %s23
    %p34 = scmp.eq.s32.totalorder %s14, 0
    %p35 = por %p33, %p34
    %p36 = scmp.ne.s32.totalorder %s22, %s23
    %p37 = scmp.eq.s32.totalorder %s15, 1
    %p38 = por %p36, %p37
    %p40 = scmp.ne.s32.totalorder %s23, %s39
    %p41 = scmp.eq.s32.totalorder %s15, 0
    %p42 = por %p40, %p41
    %s44 = sadd.s32 %s43, 1
    %p47 = scmp.eq.s32.totalorder %s9, 1
    %p48 = scmp.ne.s32.totalorder %s43, %s45
    %p49 = scmp.eq.s32.totalorder %s9, 0
    %p50 = por %p48, %p49
    %p51 = scmp.ne.s32.totalorder %s43, %s45
    %p52 = scmp.eq.s32.totalorder %s14, 1
    %p53 = por %p51, %p52
    %p54 = scmp.ne.s32.totalorder %s45, %s46
    %p55 = scmp.eq.s32.totalorder %s14, 0
    %p56 = por %p54, %p55
    %p57 = scmp.ne.s32.totalorder %s45, %s46
    %p58 = scmp.eq.s32.totalorder %s15, 1
    %p59 = por %p57, %p58
    %p61 = scmp.ne.s32.totalorder %s46, %s60
    %p62 = scmp.eq.s32.totalorder %s15, 0
    %p63 = por %p61, %p62
    %s65 = sadd.s32 %s64, 1
    %p68 = scmp.eq.s32.totalorder %s9, 1
    %p69 = scmp.ne.s32.totalorder %s64, %s66
    %p70 = scmp.eq.s32.totalorder %s9, 0
    %p71 = por %p69, %p70
    %p72 = scmp.ne.s32.totalorder %s64, %s66
    %p73 = scmp.eq.s32.totalorder %s14, 1
    %p74 = por %p72, %p73
    %p75 = scmp.ne.s32.totalorder %s66, %s67
    %p76 = scmp.eq.s32.totalorder %s14, 0
    %p77 = por %p75, %p76
    %p78 = scmp.ne.s32.totalorder %s66, %s67
    %p79 = scmp.eq.s32.totalorder %s15, 1
    %p80 = por %p78, %p79
    %p82 = scmp.ne.s32.totalorder %s67, %s81
    %p83 = scmp.eq.s32.totalorder %s15, 0
    %p84 = por %p82, %p83
    %s85 = ssub.s32 %s9, %s16
    %p86 = scmp.eq.s32.totalorder %s85, 0
    %s88 = sadd.s32 %s87, 1
    %s89 = scalar_select %p86, %s87, %s88
    %p92 = pneg %p86
    %p93 = scmp.eq.s32.totalorder %s9, 1
    %p94 = por %p92, %p93
    %p95 = scmp.ne.s32.totalorder %s87, %s90
    %p96 = scmp.eq.s32.totalorder %s9, 0
    %p97 = por %p95, %p96
    %p98 = scmp.ne.s32.totalorder %s87, %s90
    %p99 = scmp.eq.s32.totalorder %s14, 1
    %p100 = por %p98, %p99
    %p101 = scmp.ne.s32.totalorder %s90, %s91
    %p102 = scmp.eq.s32.totalorder %s14, 0
    %p103 = por %p101, %p102
    %p104 = scmp.ne.s32.totalorder %s90, %s91
    %p105 = scmp.eq.s32.totalorder %s15, 1
    %p106 = por %p104, %p105
    %p108 = scmp.ne.s32.totalorder %s91, %s107
    %p109 = scmp.eq.s32.totalorder %s15, 0
    %p110 = por %p108, %p109
    %p111 = scmp.le.s32.totalorder 1, %s9
    %p112 = scmp.lt.s32.totalorder %s9, 3
    %p113 = pnand %p111, %p112
    %p114 = pneg %p113
    // Predicated region
    $region9: #{resnet_block_forward.1} parent=5 // pred_check
      _
    $region10: #{resnet_block_forward.1} parent=5 // pred_check_branch
      %116 = sbr.rel (%p113) target = $region12
    $region11: #{resnet_block_forward.1} parent=5 // pred_region
      %s117 = ssub.s32 %s9, 1
      // Predicated region
      $region13: #{resnet_block_forward.1} parent=11 // pred_check
        %p118 = pneg %p56
      $region14: #{resnet_block_forward.1} parent=11 // pred_check_branch
        %120 = sbr.rel (%p118) target = $region16
      $region15: #{resnet_block_forward.1} parent=11 // pred_region
        _
      $region16: #{resnet_block_forward.1} parent=11 // pred_fallthru
        _
      // Predicated region
      $region17: #{resnet_block_forward.1} parent=11 // pred_check
        %p121 = pneg %p77
      $region18: #{resnet_block_forward.1} parent=11 // pred_check_branch
        %123 = sbr.rel (%p121) target = $region20
      $region19: #{resnet_block_forward.1} parent=11 // pred_region
        _
      $region20: #{resnet_block_forward.1} parent=11 // pred_fallthru
        _
    $region12: #{resnet_block_forward.1} parent=5 // pred_fallthru
      _
    %p124 = scmp.lt.s32.totalorder %s9, 2
    // Predicated region
    $region21: #{resnet_block_forward.1} parent=5 // pred_check
      %p125 = pneg %p124
    $region22: #{resnet_block_forward.1} parent=5 // pred_check_branch
      %127 = sbr.rel (%p125) target = $region24
    $region23: #{resnet_block_forward.1} parent=5 // pred_region
      // Predicated region
      $region25: #{resnet_block_forward.1} parent=23 // pred_check
        %p128 = pneg %p29
      $region26: #{resnet_block_forward.1} parent=23 // pred_check_branch
        %130 = sbr.rel (%p128) target = $region28
      $region27: #{resnet_block_forward.1} parent=23 // pred_region
        %p131 = scmp.lt.s32.totalorder %s9, 1
        %s132 = scalar_select %p131, %s9, 1
        %s133 = smul.addr %s132, 4
        %s134 = smul.addr %s133, 8
        %s135 = scalar_lea.vmem %s0, %s134
      $region28: #{resnet_block_forward.1} parent=23 // pred_fallthru
        _
    $region24: #{resnet_block_forward.1} parent=5 // pred_fallthru
      _
    %p136 = scmp.le.s32.totalorder 1, %s9
    %p137 = scmp.lt.s32.totalorder %s9, 3
    %p138 = pnand %p136, %p137
    %p139 = pneg %p138
    // Predicated region
    $region29: #{resnet_block_forward.1} parent=5 // pred_check
      _
    $region30: #{resnet_block_forward.1} parent=5 // pred_check_branch
      %141 = sbr.rel (%p138) target = $region32
    $region31: #{resnet_block_forward.1} parent=5 // pred_region
      %s142 = ssub.s32 %s9, 1
      %p143 = scmp.lt.s32.totalorder %s14, 1
      %s144 = scalar_select %p143, %s14, 1
      %s145 = smul.addr %s144, 4
      %s146 = smul.addr %s145, 8
      %s147 = scalar_lea.vmem %s0, %s146
      %p148 = pneg %p35
      %p149 = pneg %p32
      %p150 = pneg %p56
      %p151 = pneg %p53
      %p152 = pneg %p77
      %p153 = pneg %p74
      %p154 = pneg %p103
      %p155 = pneg %p100
      %p156 = scmp.lt.s32.totalorder %s14, 1
      %s157 = scalar_select %p156, %s14, 1
      %s158 = smul.addr %s157, 4
      %s159 = smul.addr %s158, 8
      %s160 = scalar_lea.vmem %s3, %s159
      %p161 = scmp.lt.s32.totalorder %s14, 1
      %s162 = scalar_select %p161, %s14, 1
      %s163 = smul.addr %s162, 4
      %s164 = smul.addr %s163, 8
      %s165 = scalar_lea.vmem %s0, %s164
      %p166 = scmp.lt.s32.totalorder %s14, 1
      %s167 = scalar_select %p166, %s14, 1
      %s168 = smul.addr %s167, 4
      %s169 = smul.addr %s168, 8
      %s170 = scalar_lea.vmem %s3, %s169
      %v171 = vld [vmem:[%s165] sm:$0xff]
      %v172 = vld [vmem:[%s165 + $0x8] sm:$0xff]
      %v173 = vld [vmem:[%s165 + $0x10] sm:$0xff]
      %v174 = vld [vmem:[%s165 + $0x18] sm:$0xff]
      %v175 = vlaneseq
      %vm176 = vcmp.ge.s32.totalorder %v175, 0
      %vm177 = vcmp.lt.s32.totalorder %v175, 256
      %vm178 = vmand %vm176, %vm177
      %179 = vst.msk [vmem:[#allocation2] ss:$8 sm:$0x3] %vm178, 0.0
      %180 = vst.msk [vmem:[#allocation2] ss:$8 sm:$0x0] %vm178, 0.0
      %s181 = scalar_lea.vmem [#allocation2], 33
      %182 = vst.msk [vmem:[%s181] ss:$8 sm:$0x3] %vm178, 0.0
      %183 = vst.msk [vmem:[%s181] ss:$8 sm:$0x0] %vm178, 0.0
      %vm188 = vcmask 1040384
      %v189 = vrot.slane %v171, 7
      %v190 = vrot.slane %v172, 7
      %v191 = vrot.slane %v173, 7
      %v192 = vsel %vm188, %v189, %v191
      %v193 = vrot.slane %v174, 7
      %v194 = vsel %vm188, %v190, %v193
      %201 = vst [vmem:[#allocation2] sm:$0xfe] %v189
      %202 = vst [vmem:[#allocation2 + $0x8] sm:$0xfe] %v190
      %203 = vst [vmem:[#allocation2 + $0x10] sm:$0xff] %v192
      %204 = vst [vmem:[#allocation2 + $0x18] sm:$0xff] %v194
      %205 = vst [vmem:[#allocation2 + $0x20] sm:$0x1] %v191
      %206 = vst [vmem:[#allocation2 + $0x28] sm:$0x1] %v193
      %v207 = vld [vmem:[#allocation2] sm:$0xff]
      %v208 = vld [vmem:[#allocation2 + $0x8] sm:$0xff]
      %v209 = vld [vmem:[#allocation2 + $0x10] sm:$0xff]
      %v210 = vld [vmem:[#allocation2 + $0x18] sm:$0xff]
      %v211 = vpack.c.bf16 %v209, %v207
      %v212 = vpack.c.bf16 %v210, %v208
      %v213 = vld [vmem:[%s1] sm:$0xff]
      %v214 = vld [vmem:[%s1 + $0x8] sm:$0xff]
      %v215 = vld [vmem:[%s1 + $0x10] sm:$0xff]
      %v216 = vld [vmem:[%s1 + $0x18] sm:$0xff]
      %v217 = vld [vmem:[%s1 + $0x20] sm:$0xff]
      %v218 = vld [vmem:[%s1 + $0x28] sm:$0xff]
      %v219 = vld [vmem:[%s1 + $0x30] sm:$0xff]
      %v220 = vld [vmem:[%s1 + $0x38] sm:$0xff]
      %v221 = vld [vmem:[%s1 + $0x40] sm:$0xff]
      %v222 = vld [vmem:[%s1 + $0x48] sm:$0xff]
      %v223 = vld [vmem:[%s1 + $0x50] sm:$0xff]
      %v224 = vld [vmem:[%s1 + $0x58] sm:$0xff]
      %v225 = vld [vmem:[%s1 + $0x60] sm:$0xff]
      %v226 = vld [vmem:[%s1 + $0x68] sm:$0xff]
      %v227 = vld [vmem:[%s1 + $0x70] sm:$0xff]
      %v228 = vld [vmem:[%s1 + $0x78] sm:$0xff]
      %v229 = vld [vmem:[%s1 + $0x80] sm:$0xff]
      %v230 = vld [vmem:[%s1 + $0x88] sm:$0xff]
      %v231 = vld [vmem:[%s1 + $0x90] sm:$0xff]
      %v232 = vld [vmem:[%s1 + $0x98] sm:$0xff]
      %v233 = vld [vmem:[%s1 + $0xa0] sm:$0xff]
      %v234 = vld [vmem:[%s1 + $0xa8] sm:$0xff]
      %v235 = vld [vmem:[%s1 + $0xb0] sm:$0xff]
      %v236 = vld [vmem:[%s1 + $0xb8] sm:$0xff]
      %v237 = vld [vmem:[%s1 + $0xc0] sm:$0xff]
      %v238 = vld [vmem:[%s1 + $0xc8] sm:$0xff]
      %v239 = vld [vmem:[%s1 + $0xd0] sm:$0xff]
      %v240 = vld [vmem:[%s1 + $0xd8] sm:$0xff]
      %v241 = vld [vmem:[%s1 + $0xe0] sm:$0xff]
      %v242 = vld [vmem:[%s1 + $0xe8] sm:$0xff]
      %v243 = vld [vmem:[%s1 + $0xf0] sm:$0xff]
      %v244 = vld [vmem:[%s1 + $0xf8] sm:$0xff]
      %v245 = vld [vmem:[#allocation2] sm:$0xfe]
      %v246 = vld [vmem:[#allocation2 + $0x8] sm:$0xfe]
      %v247 = vld [vmem:[#allocation2 + $0x20] sm:$0x1]
      %v248 = vld [vmem:[#allocation2 + $0x28] sm:$0x1]
      %v249 = vpack.c.bf16 %v209, %v245
      %v250 = vpack.c.bf16 %v210, %v246
      %v251 = vpack.c.bf16 %v247, %v247
      %v252 = vpack.c.bf16 %v248, %v248
      %s253 = scalar_lea.vmem %s1, 256
      %v254 = vld [vmem:[%s253] sm:$0xff]
      %v255 = vld [vmem:[%s253 + $0x8] sm:$0xff]
      %v256 = vld [vmem:[%s253 + $0x10] sm:$0xff]
      %v257 = vld [vmem:[%s253 + $0x18] sm:$0xff]
      %v258 = vld [vmem:[%s253 + $0x20] sm:$0xff]
      %v259 = vld [vmem:[%s253 + $0x28] sm:$0xff]
      %v260 = vld [vmem:[%s253 + $0x30] sm:$0xff]
      %v261 = vld [vmem:[%s253 + $0x38] sm:$0xff]
      %v262 = vld [vmem:[%s253 + $0x40] sm:$0xff]
      %v263 = vld [vmem:[%s253 + $0x48] sm:$0xff]
      %v264 = vld [vmem:[%s253 + $0x50] sm:$0xff]
      %v265 = vld [vmem:[%s253 + $0x58] sm:$0xff]
      %v266 = vld [vmem:[%s253 + $0x60] sm:$0xff]
      %v267 = vld [vmem:[%s253 + $0x68] sm:$0xff]
      %v268 = vld [vmem:[%s253 + $0x70] sm:$0xff]
      %v269 = vld [vmem:[%s253 + $0x78] sm:$0xff]
      %v270 = vld [vmem:[%s253 + $0x80] sm:$0xff]
      %v271 = vld [vmem:[%s253 + $0x88] sm:$0xff]
      %v272 = vld [vmem:[%s253 + $0x90] sm:$0xff]
      %v273 = vld [vmem:[%s253 + $0x98] sm:$0xff]
      %v274 = vld [vmem:[%s253 + $0xa0] sm:$0xff]
      %v275 = vld [vmem:[%s253 + $0xa8] sm:$0xff]
      %v276 = vld [vmem:[%s253 + $0xb0] sm:$0xff]
      %v277 = vld [vmem:[%s253 + $0xb8] sm:$0xff]
      %v278 = vld [vmem:[%s253 + $0xc0] sm:$0xff]
      %v279 = vld [vmem:[%s253 + $0xc8] sm:$0xff]
      %v280 = vld [vmem:[%s253 + $0xd0] sm:$0xff]
      %v281 = vld [vmem:[%s253 + $0xd8] sm:$0xff]
      %v282 = vld [vmem:[%s253 + $0xe0] sm:$0xff]
      %v283 = vld [vmem:[%s253 + $0xe8] sm:$0xff]
      %v284 = vld [vmem:[%s253 + $0xf0] sm:$0xff]
      %v285 = vld [vmem:[%s253 + $0xf8] sm:$0xff]
      %vm286 = vsmask.f32 7424
      %v288 = vshrl.u32 %v249, 16
      %v290 = vshll.u32 %v249, 16
      %v292 = vrot.slane %v290, 1
      %v293 = vor.u32 %v288, %v292
      %v295 = vshll.u32 %v251, 16
      %v297 = vrot.slane %v295, 1
      %v298 = vsel %vm286, %v293, %v297
      %v300 = vshrl.u32 %v250, 16
      %v302 = vshll.u32 %v250, 16
      %v304 = vrot.slane %v302, 1
      %v305 = vor.u32 %v300, %v304
      %v307 = vshll.u32 %v252, 16
      %v309 = vrot.slane %v307, 1
      %v310 = vsel %vm286, %v305, %v309
      %v345 = vunpack.c.l.b16 %v254
      %v346 = vunpack.c.h.b16 %v254
      %v347 = vunpack.c.l.b16 %v255
      %v348 = vunpack.c.h.b16 %v255
      %v349 = vunpack.c.l.b16 %v256
      %v350 = vunpack.c.h.b16 %v256
      %v351 = vunpack.c.l.b16 %v257
      %v352 = vunpack.c.h.b16 %v257
      %v353 = vunpack.c.l.b16 %v258
      %v354 = vunpack.c.h.b16 %v258
      %v355 = vunpack.c.l.b16 %v259
      %v356 = vunpack.c.h.b16 %v259
      %v357 = vunpack.c.l.b16 %v260
      %v358 = vunpack.c.h.b16 %v260
      %v359 = vunpack.c.l.b16 %v261
      %v360 = vunpack.c.h.b16 %v261
      %v361 = vunpack.c.l.b16 %v262
      %v362 = vunpack.c.h.b16 %v262
      %v363 = vunpack.c.l.b16 %v263
      %v364 = vunpack.c.h.b16 %v263
      %v365 = vunpack.c.l.b16 %v264
      %v366 = vunpack.c.h.b16 %v264
      %v367 = vunpack.c.l.b16 %v265
      %v368 = vunpack.c.h.b16 %v265
      %v369 = vunpack.c.l.b16 %v266
      %v370 = vunpack.c.h.b16 %v266
      %v371 = vunpack.c.l.b16 %v267
      %v372 = vunpack.c.h.b16 %v267
      %v373 = vunpack.c.l.b16 %v268
      %v374 = vunpack.c.h.b16 %v268
      %v375 = vunpack.c.l.b16 %v269
      %v376 = vunpack.c.h.b16 %v269
      %v377 = vunpack.c.l.b16 %v270
      %v378 = vunpack.c.h.b16 %v270
      %v379 = vunpack.c.l.b16 %v271
      %v380 = vunpack.c.h.b16 %v271
      %v381 = vunpack.c.l.b16 %v272
      %v382 = vunpack.c.h.b16 %v272
      %v383 = vunpack.c.l.b16 %v273
      %v384 = vunpack.c.h.b16 %v273
      %v385 = vunpack.c.l.b16 %v274
      %v386 = vunpack.c.h.b16 %v274
      %v387 = vunpack.c.l.b16 %v275
      %v388 = vunpack.c.h.b16 %v275
      %v389 = vunpack.c.l.b16 %v276
      %v390 = vunpack.c.h.b16 %v276
      %v391 = vunpack.c.l.b16 %v277
      %v392 = vunpack.c.h.b16 %v277
      %v393 = vunpack.c.l.b16 %v278
      %v394 = vunpack.c.h.b16 %v278
      %v395 = vunpack.c.l.b16 %v279
      %v396 = vunpack.c.h.b16 %v279
      %v397 = vunpack.c.l.b16 %v280
      %v398 = vunpack.c.h.b16 %v280
      %v399 = vunpack.c.l.b16 %v281
      %v400 = vunpack.c.h.b16 %v281
      %v401 = vunpack.c.l.b16 %v282
      %v402 = vunpack.c.h.b16 %v282
      %v403 = vunpack.c.l.b16 %v283
      %v404 = vunpack.c.h.b16 %v283
      %v405 = vunpack.c.l.b16 %v284
      %v406 = vunpack.c.h.b16 %v284
      %v407 = vunpack.c.l.b16 %v285
      %v408 = vunpack.c.h.b16 %v285
      %v409 = vpack.c.b16 %v347, %v345
      %v410 = vpack.c.b16 %v348, %v346
      %v411 = vpack.c.b16 %v351, %v349
      %v412 = vpack.c.b16 %v352, %v350
      %v413 = vpack.c.b16 %v355, %v353
      %v414 = vpack.c.b16 %v356, %v354
      %v415 = vpack.c.b16 %v359, %v357
      %v416 = vpack.c.b16 %v360, %v358
      %v417 = vpack.c.b16 %v363, %v361
      %v418 = vpack.c.b16 %v364, %v362
      %v419 = vpack.c.b16 %v367, %v365
      %v420 = vpack.c.b16 %v368, %v366
      %v421 = vpack.c.b16 %v371, %v369
      %v422 = vpack.c.b16 %v372, %v370
      %v423 = vpack.c.b16 %v375, %v373
      %v424 = vpack.c.b16 %v376, %v374
      %v425 = vpack.c.b16 %v379, %v377
      %v426 = vpack.c.b16 %v380, %v378
      %v427 = vpack.c.b16 %v383, %v381
      %v428 = vpack.c.b16 %v384, %v382
      %v429 = vpack.c.b16 %v387, %v385
      %v430 = vpack.c.b16 %v388, %v386
      %v431 = vpack.c.b16 %v391, %v389
      %v432 = vpack.c.b16 %v392, %v390
      %v433 = vpack.c.b16 %v395, %v393
      %v434 = vpack.c.b16 %v396, %v394
      %v435 = vpack.c.b16 %v399, %v397
      %v436 = vpack.c.b16 %v400, %v398
      %v437 = vpack.c.b16 %v403, %v401
      %v438 = vpack.c.b16 %v404, %v402
      %v439 = vpack.c.b16 %v407, %v405
      %v440 = vpack.c.b16 %v408, %v406
      %473 = vmatpush.bf16.msra.mxu0 %v423
      %474 = vmatpush.bf16.msra.mxu0 %v421
      %475 = vmatpush.bf16.msra.mxu0 %v419
      %476 = vmatpush.bf16.msra.mxu0 %v417
      %477 = vmatpush.bf16.msra.mxu0 %v415
      %478 = vmatpush.bf16.msra.mxu0 %v413
      %479 = vmatpush.bf16.msra.mxu0 %v411
      %480 = vmatpush.bf16.msra.mxu0 %v409
      %481 = vmatmul.bf16.gmra.mxu0 %v298
      %v482 = vpop.f32.mrf.mxu0
      %v483 = vadd.f32 0.0, %v482
      %v484 = vpop.f32.mrf.mxu0
      %v485 = vadd.f32 0.0, %v484
      %486 = vdwg.mxu0
      %487 = vmatpush.bf16.msra.mxu0 %v439
      %488 = vmatpush.bf16.msra.mxu0 %v437
      %489 = vmatpush.bf16.msra.mxu0 %v435
      %490 = vmatpush.bf16.msra.mxu0 %v433
      %491 = vmatpush.bf16.msra.mxu0 %v431
      %492 = vmatpush.bf16.msra.mxu0 %v429
      %493 = vmatpush.bf16.msra.mxu0 %v427
      %494 = vmatpush.bf16.msra.mxu0 %v425
      %495 = vmatmul.bf16.gmra.mxu0 %v310
      %v496 = vpop.f32.mrf.mxu0
      %v497 = vadd.f32 %v483, %v496
      %v498 = vpop.f32.mrf.mxu0
      %v499 = vadd.f32 %v485, %v498
      %500 = vdwg.mxu0
      %501 = vmatpush.bf16.msra.mxu0 %v424
      %502 = vmatpush.bf16.msra.mxu0 %v422
      %503 = vmatpush.bf16.msra.mxu0 %v420
      %504 = vmatpush.bf16.msra.mxu0 %v418
      %505 = vmatpush.bf16.msra.mxu0 %v416
      %506 = vmatpush.bf16.msra.mxu0 %v414
      %507 = vmatpush.bf16.msra.mxu0 %v412
      %508 = vmatpush.bf16.msra.mxu0 %v410
      %509 = vmatmul.bf16.gmra.mxu0 %v298
      %v510 = vpop.f32.mrf.mxu0
      %v511 = vadd.f32 0.0, %v510
      %v512 = vpop.f32.mrf.mxu0
      %v513 = vadd.f32 0.0, %v512
      %514 = vdwg.mxu0
      %515 = vmatpush.bf16.msra.mxu0 %v440
      %516 = vmatpush.bf16.msra.mxu0 %v438
      %517 = vmatpush.bf16.msra.mxu0 %v436
      %518 = vmatpush.bf16.msra.mxu0 %v434
      %519 = vmatpush.bf16.msra.mxu0 %v432
      %520 = vmatpush.bf16.msra.mxu0 %v430
      %521 = vmatpush.bf16.msra.mxu0 %v428
      %522 = vmatpush.bf16.msra.mxu0 %v426
      %523 = vmatmul.bf16.gmra.mxu0 %v310
      %v524 = vpop.f32.mrf.mxu0
      %v525 = vadd.f32 %v511, %v524
      %v526 = vpop.f32.mrf.mxu0
      %v527 = vadd.f32 %v513, %v526
      %528 = vdwg.mxu0
      %v561 = vunpack.c.l.b16 %v213
      %v562 = vunpack.c.h.b16 %v213
      %v563 = vunpack.c.l.b16 %v214
      %v564 = vunpack.c.h.b16 %v214
      %v565 = vunpack.c.l.b16 %v215
      %v566 = vunpack.c.h.b16 %v215
      %v567 = vunpack.c.l.b16 %v216
      %v568 = vunpack.c.h.b16 %v216
      %v569 = vunpack.c.l.b16 %v217
      %v570 = vunpack.c.h.b16 %v217
      %v571 = vunpack.c.l.b16 %v218
      %v572 = vunpack.c.h.b16 %v218
      %v573 = vunpack.c.l.b16 %v219
      %v574 = vunpack.c.h.b16 %v219
      %v575 = vunpack.c.l.b16 %v220
      %v576 = vunpack.c.h.b16 %v220
      %v577 = vunpack.c.l.b16 %v221
      %v578 = vunpack.c.h.b16 %v221
      %v579 = vunpack.c.l.b16 %v222
      %v580 = vunpack.c.h.b16 %v222
      %v581 = vunpack.c.l.b16 %v223
      %v582 = vunpack.c.h.b16 %v223
      %v583 = vunpack.c.l.b16 %v224
      %v584 = vunpack.c.h.b16 %v224
      %v585 = vunpack.c.l.b16 %v225
      %v586 = vunpack.c.h.b16 %v225
      %v587 = vunpack.c.l.b16 %v226
      %v588 = vunpack.c.h.b16 %v226
      %v589 = vunpack.c.l.b16 %v227
      %v590 = vunpack.c.h.b16 %v227
      %v591 = vunpack.c.l.b16 %v228
      %v592 = vunpack.c.h.b16 %v228
      %v593 = vunpack.c.l.b16 %v229
      %v594 = vunpack.c.h.b16 %v229
      %v595 = vunpack.c.l.b16 %v230
      %v596 = vunpack.c.h.b16 %v230
      %v597 = vunpack.c.l.b16 %v231
      %v598 = vunpack.c.h.b16 %v231
      %v599 = vunpack.c.l.b16 %v232
      %v600 = vunpack.c.h.b16 %v232
      %v601 = vunpack.c.l.b16 %v233
      %v602 = vunpack.c.h.b16 %v233
      %v603 = vunpack.c.l.b16 %v234
      %v604 = vunpack.c.h.b16 %v234
      %v605 = vunpack.c.l.b16 %v235
      %v606 = vunpack.c.h.b16 %v235
      %v607 = vunpack.c.l.b16 %v236
      %v608 = vunpack.c.h.b16 %v236
      %v609 = vunpack.c.l.b16 %v237
      %v610 = vunpack.c.h.b16 %v237
      %v611 = vunpack.c.l.b16 %v238
      %v612 = vunpack.c.h.b16 %v238
      %v613 = vunpack.c.l.b16 %v239
      %v614 = vunpack.c.h.b16 %v239
      %v615 = vunpack.c.l.b16 %v240
      %v616 = vunpack.c.h.b16 %v240
      %v617 = vunpack.c.l.b16 %v241
      %v618 = vunpack.c.h.b16 %v241
      %v619 = vunpack.c.l.b16 %v242
      %v620 = vunpack.c.h.b16 %v242
      %v621 = vunpack.c.l.b16 %v243
      %v622 = vunpack.c.h.b16 %v243
      %v623 = vunpack.c.l.b16 %v244
      %v624 = vunpack.c.h.b16 %v244
      %v625 = vpack.c.b16 %v563, %v561
      %v626 = vpack.c.b16 %v564, %v562
      %v627 = vpack.c.b16 %v567, %v565
      %v628 = vpack.c.b16 %v568, %v566
      %v629 = vpack.c.b16 %v571, %v569
      %v630 = vpack.c.b16 %v572, %v570
      %v631 = vpack.c.b16 %v575, %v573
      %v632 = vpack.c.b16 %v576, %v574
      %v633 = vpack.c.b16 %v579, %v577
      %v634 = vpack.c.b16 %v580, %v578
      %v635 = vpack.c.b16 %v583, %v581
      %v636 = vpack.c.b16 %v584, %v582
      %v637 = vpack.c.b16 %v587, %v585
      %v638 = vpack.c.b16 %v588, %v586
      %v639 = vpack.c.b16 %v591, %v589
      %v640 = vpack.c.b16 %v592, %v590
      %v641 = vpack.c.b16 %v595, %v593
      %v642 = vpack.c.b16 %v596, %v594
      %v643 = vpack.c.b16 %v599, %v597
      %v644 = vpack.c.b16 %v600, %v598
      %v645 = vpack.c.b16 %v603, %v601
      %v646 = vpack.c.b16 %v604, %v602
      %v647 = vpack.c.b16 %v607, %v605
      %v648 = vpack.c.b16 %v608, %v606
      %v649 = vpack.c.b16 %v611, %v609
      %v650 = vpack.c.b16 %v612, %v610
      %v651 = vpack.c.b16 %v615, %v613
      %v652 = vpack.c.b16 %v616, %v614
      %v653 = vpack.c.b16 %v619, %v617
      %v654 = vpack.c.b16 %v620, %v618
      %v655 = vpack.c.b16 %v623, %v621
      %v656 = vpack.c.b16 %v624, %v622
      %689 = vmatpush.bf16.msra.mxu0 %v639
      %690 = vmatpush.bf16.msra.mxu0 %v637
      %691 = vmatpush.bf16.msra.mxu0 %v635
      %692 = vmatpush.bf16.msra.mxu0 %v633
      %693 = vmatpush.bf16.msra.mxu0 %v631
      %694 = vmatpush.bf16.msra.mxu0 %v629
      %695 = vmatpush.bf16.msra.mxu0 %v627
      %696 = vmatpush.bf16.msra.mxu0 %v625
      %697 = vmatmul.bf16.gmra.mxu0 %v211
      %v698 = vpop.f32.mrf.mxu0
      %v699 = vadd.f32 %v497, %v698
      %v700 = vpop.f32.mrf.mxu0
      %v701 = vadd.f32 %v499, %v700
      %702 = vdwg.mxu0
      %703 = vmatpush.bf16.msra.mxu0 %v655
      %704 = vmatpush.bf16.msra.mxu0 %v653
      %705 = vmatpush.bf16.msra.mxu0 %v651
      %706 = vmatpush.bf16.msra.mxu0 %v649
      %707 = vmatpush.bf16.msra.mxu0 %v647
      %708 = vmatpush.bf16.msra.mxu0 %v645
      %709 = vmatpush.bf16.msra.mxu0 %v643
      %710 = vmatpush.bf16.msra.mxu0 %v641
      %711 = vmatmul.bf16.gmra.mxu0 %v212
      %v712 = vpop.f32.mrf.mxu0
      %v713 = vadd.f32 %v699, %v712
      %v714 = vpop.f32.mrf.mxu0
      %v715 = vadd.f32 %v701, %v714
      %716 = vdwg.mxu0
      %717 = vmatpush.bf16.msra.mxu0 %v640
      %718 = vmatpush.bf16.msra.mxu0 %v638
      %719 = vmatpush.bf16.msra.mxu0 %v636
      %720 = vmatpush.bf16.msra.mxu0 %v634
      %721 = vmatpush.bf16.msra.mxu0 %v632
      %722 = vmatpush.bf16.msra.mxu0 %v630
      %723 = vmatpush.bf16.msra.mxu0 %v628
      %724 = vmatpush.bf16.msra.mxu0 %v626
      %725 = vmatmul.bf16.gmra.mxu0 %v211
      %v726 = vpop.f32.mrf.mxu0
      %v727 = vadd.f32 %v525, %v726
      %v728 = vpop.f32.mrf.mxu0
      %v729 = vadd.f32 %v527, %v728
      %730 = vdwg.mxu0
      %731 = vmatpush.bf16.msra.mxu0 %v656
      %732 = vmatpush.bf16.msra.mxu0 %v654
      %733 = vmatpush.bf16.msra.mxu0 %v652
      %734 = vmatpush.bf16.msra.mxu0 %v650
      %735 = vmatpush.bf16.msra.mxu0 %v648
      %736 = vmatpush.bf16.msra.mxu0 %v646
      %737 = vmatpush.bf16.msra.mxu0 %v644
      %738 = vmatpush.bf16.msra.mxu0 %v642
      %739 = vmatmul.bf16.gmra.mxu0 %v212
      %v740 = vpop.f32.mrf.mxu0
      %v741 = vadd.f32 %v727, %v740
      %v742 = vpop.f32.mrf.mxu0
      %v743 = vadd.f32 %v729, %v742
      %744 = vdwg.mxu0
      %v745 = vld [vmem:[#allocation2] sm:$0xfc]
      %v746 = vld [vmem:[#allocation2 + $0x8] sm:$0xfc]
      %v747 = vld [vmem:[#allocation2 + $0x20] sm:$0x3]
      %v748 = vld [vmem:[#allocation2 + $0x28] sm:$0x3]
      %v749 = vpack.c.bf16 %v209, %v745
      %v750 = vpack.c.bf16 %v210, %v746
      %v751 = vpack.c.bf16 %v747, %v747
      %v752 = vpack.c.bf16 %v748, %v748
      %s753 = scalar_lea.vmem %s1, 512
      %v754 = vld [vmem:[%s753] sm:$0xff]
      %v755 = vld [vmem:[%s753 + $0x8] sm:$0xff]
      %v756 = vld [vmem:[%s753 + $0x10] sm:$0xff]
      %v757 = vld [vmem:[%s753 + $0x18] sm:$0xff]
      %v758 = vld [vmem:[%s753 + $0x20] sm:$0xff]
      %v759 = vld [vmem:[%s753 + $0x28] sm:$0xff]
      %v760 = vld [vmem:[%s753 + $0x30] sm:$0xff]
      %v761 = vld [vmem:[%s753 + $0x38] sm:$0xff]
      %v762 = vld [vmem:[%s753 + $0x40] sm:$0xff]
      %v763 = vld [vmem:[%s753 + $0x48] sm:$0xff]
      %v764 = vld [vmem:[%s753 + $0x50] sm:$0xff]
      %v765 = vld [vmem:[%s753 + $0x58] sm:$0xff]
      %v766 = vld [vmem:[%s753 + $0x60] sm:$0xff]
      %v767 = vld [vmem:[%s753 + $0x68] sm:$0xff]
      %v768 = vld [vmem:[%s753 + $0x70] sm:$0xff]
      %v769 = vld [vmem:[%s753 + $0x78] sm:$0xff]
      %v770 = vld [vmem:[%s753 + $0x80] sm:$0xff]
      %v771 = vld [vmem:[%s753 + $0x88] sm:$0xff]
      %v772 = vld [vmem:[%s753 + $0x90] sm:$0xff]
      %v773 = vld [vmem:[%s753 + $0x98] sm:$0xff]
      %v774 = vld [vmem:[%s753 + $0xa0] sm:$0xff]
      %v775 = vld [vmem:[%s753 + $0xa8] sm:$0xff]
      %v776 = vld [vmem:[%s753 + $0xb0] sm:$0xff]
      %v777 = vld [vmem:[%s753 + $0xb8] sm:$0xff]
      %v778 = vld [vmem:[%s753 + $0xc0] sm:$0xff]
      %v779 = vld [vmem:[%s753 + $0xc8] sm:$0xff]
      %v780 = vld [vmem:[%s753 + $0xd0] sm:$0xff]
      %v781 = vld [vmem:[%s753 + $0xd8] sm:$0xff]
      %v782 = vld [vmem:[%s753 + $0xe0] sm:$0xff]
      %v783 = vld [vmem:[%s753 + $0xe8] sm:$0xff]
      %v784 = vld [vmem:[%s753 + $0xf0] sm:$0xff]
      %v785 = vld [vmem:[%s753 + $0xf8] sm:$0xff]
      %vm790 = vcmask 1046528
      %v791 = vrot.slane %v749, 1
      %v792 = vrot.slane %v751, 1
      %v793 = vsel %vm790, %v791, %v792
      %v794 = vrot.slane %v750, 1
      %v795 = vrot.slane %v752, 1
      %v796 = vsel %vm790, %v794, %v795
      %v831 = vunpack.c.l.b16 %v754
      %v832 = vunpack.c.h.b16 %v754
      %v833 = vunpack.c.l.b16 %v755
      %v834 = vunpack.c.h.b16 %v755
      %v835 = vunpack.c.l.b16 %v756
      %v836 = vunpack.c.h.b16 %v756
      %v837 = vunpack.c.l.b16 %v757
      %v838 = vunpack.c.h.b16 %v757
      %v839 = vunpack.c.l.b16 %v758
      %v840 = vunpack.c.h.b16 %v758
      %v841 = vunpack.c.l.b16 %v759
      %v842 = vunpack.c.h.b16 %v759
      %v843 = vunpack.c.l.b16 %v760
      %v844 = vunpack.c.h.b16 %v760
      %v845 = vunpack.c.l.b16 %v761
      %v846 = vunpack.c.h.b16 %v761
      %v847 = vunpack.c.l.b16 %v762
      %v848 = vunpack.c.h.b16 %v762
      %v849 = vunpack.c.l.b16 %v763
      %v850 = vunpack.c.h.b16 %v763
      %v851 = vunpack.c.l.b16 %v764
      %v852 = vunpack.c.h.b16 %v764
      %v853 = vunpack.c.l.b16 %v765
      %v854 = vunpack.c.h.b16 %v765
      %v855 = vunpack.c.l.b16 %v766
      %v856 = vunpack.c.h.b16 %v766
      %v857 = vunpack.c.l.b16 %v767
      %v858 = vunpack.c.h.b16 %v767
      %v859 = vunpack.c.l.b16 %v768
      %v860 = vunpack.c.h.b16 %v768
      %v861 = vunpack.c.l.b16 %v769
      %v862 = vunpack.c.h.b16 %v769
      %v863 = vunpack.c.l.b16 %v770
      %v864 = vunpack.c.h.b16 %v770
      %v865 = vunpack.c.l.b16 %v771
      %v866 = vunpack.c.h.b16 %v771
      %v867 = vunpack.c.l.b16 %v772
      %v868 = vunpack.c.h.b16 %v772
      %v869 = vunpack.c.l.b16 %v773
      %v870 = vunpack.c.h.b16 %v773
      %v871 = vunpack.c.l.b16 %v774
      %v872 = vunpack.c.h.b16 %v774
      %v873 = vunpack.c.l.b16 %v775
      %v874 = vunpack.c.h.b16 %v775
      %v875 = vunpack.c.l.b16 %v776
      %v876 = vunpack.c.h.b16 %v776
      %v877 = vunpack.c.l.b16 %v777
      %v878 = vunpack.c.h.b16 %v777
      %v879 = vunpack.c.l.b16 %v778
      %v880 = vunpack.c.h.b16 %v778
      %v881 = vunpack.c.l.b16 %v779
      %v882 = vunpack.c.h.b16 %v779
      %v883 = vunpack.c.l.b16 %v780
      %v884 = vunpack.c.h.b16 %v780
      %v885 = vunpack.c.l.b16 %v781
      %v886 = vunpack.c.h.b16 %v781
      %v887 = vunpack.c.l.b16 %v782
      %v888 = vunpack.c.h.b16 %v782
      %v889 = vunpack.c.l.b16 %v783
      %v890 = vunpack.c.h.b16 %v783
      %v891 = vunpack.c.l.b16 %v784
      %v892 = vunpack.c.h.b16 %v784
      %v893 = vunpack.c.l.b16 %v785
      %v894 = vunpack.c.h.b16 %v785
      %v895 = vpack.c.b16 %v833, %v831
      %v896 = vpack.c.b16 %v834, %v832
      %v897 = vpack.c.b16 %v837, %v835
      %v898 = vpack.c.b16 %v838, %v836
      %v899 = vpack.c.b16 %v841, %v839
      %v900 = vpack.c.b16 %v842, %v840
      %v901 = vpack.c.b16 %v845, %v843
      %v902 = vpack.c.b16 %v846, %v844
      %v903 = vpack.c.b16 %v849, %v847
      %v904 = vpack.c.b16 %v850, %v848
      %v905 = vpack.c.b16 %v853, %v851
      %v906 = vpack.c.b16 %v854, %v852
      %v907 = vpack.c.b16 %v857, %v855
      %v908 = vpack.c.b16 %v858, %v856
      %v909 = vpack.c.b16 %v861, %v859
      %v910 = vpack.c.b16 %v862, %v860
      %v911 = vpack.c.b16 %v865, %v863
      %v912 = vpack.c.b16 %v866, %v864
      %v913 = vpack.c.b16 %v869, %v867
      %v914 = vpack.c.b16 %v870, %v868
      %v915 = vpack.c.b16 %v873, %v871
      %v916 = vpack.c.b16 %v874, %v872
      %v917 = vpack.c.b16 %v877, %v875
      %v918 = vpack.c.b16 %v878, %v876
      %v919 = vpack.c.b16 %v881, %v879
      %v920 = vpack.c.b16 %v882, %v880
      %v921 = vpack.c.b16 %v885, %v883
      %v922 = vpack.c.b16 %v886, %v884
      %v923 = vpack.c.b16 %v889, %v887
      %v924 = vpack.c.b16 %v890, %v888
      %v925 = vpack.c.b16 %v893, %v891
      %v926 = vpack.c.b16 %v894, %v892
      %959 = vmatpush.bf16.msra.mxu0 %v909
      %960 = vmatpush.bf16.msra.mxu0 %v907
      %961 = vmatpush.bf16.msra.mxu0 %v905
      %962 = vmatpush.bf16.msra.mxu0 %v903
      %963 = vmatpush.bf16.msra.mxu0 %v901
      %964 = vmatpush.bf16.msra.mxu0 %v899
      %965 = vmatpush.bf16.msra.mxu0 %v897
      %966 = vmatpush.bf16.msra.mxu0 %v895
      %967 = vmatmul.bf16.gmra.mxu0 %v793
      %v968 = vpop.f32.mrf.mxu0
      %v969 = vadd.f32 0.0, %v968
      %v970 = vpop.f32.mrf.mxu0
      %v971 = vadd.f32 0.0, %v970
      %972 = vdwg.mxu0
      %973 = vmatpush.bf16.msra.mxu0 %v925
      %974 = vmatpush.bf16.msra.mxu0 %v923
      %975 = vmatpush.bf16.msra.mxu0 %v921
      %976 = vmatpush.bf16.msra.mxu0 %v919
      %977 = vmatpush.bf16.msra.mxu0 %v917
      %978 = vmatpush.bf16.msra.mxu0 %v915
      %979 = vmatpush.bf16.msra.mxu0 %v913
      %980 = vmatpush.bf16.msra.mxu0 %v911
      %981 = vmatmul.bf16.gmra.mxu0 %v796
      %v982 = vpop.f32.mrf.mxu0
      %v983 = vadd.f32 %v969, %v982
      %v984 = vpop.f32.mrf.mxu0
      %v985 = vadd.f32 %v971, %v984
      %986 = vdwg.mxu0
      %987 = vmatpush.bf16.msra.mxu0 %v910
      %988 = vmatpush.bf16.msra.mxu0 %v908
      %989 = vmatpush.bf16.msra.mxu0 %v906
      %990 = vmatpush.bf16.msra.mxu0 %v904
      %991 = vmatpush.bf16.msra.mxu0 %v902
      %992 = vmatpush.bf16.msra.mxu0 %v900
      %993 = vmatpush.bf16.msra.mxu0 %v898
      %994 = vmatpush.bf16.msra.mxu0 %v896
      %995 = vmatmul.bf16.gmra.mxu0 %v793
      %v996 = vpop.f32.mrf.mxu0
      %v997 = vadd.f32 0.0, %v996
      %v998 = vpop.f32.mrf.mxu0
      %v999 = vadd.f32 0.0, %v998
      %1000 = vdwg.mxu0
      %1001 = vmatpush.bf16.msra.mxu0 %v926
      %1002 = vmatpush.bf16.msra.mxu0 %v924
      %1003 = vmatpush.bf16.msra.mxu0 %v922
      %1004 = vmatpush.bf16.msra.mxu0 %v920
      %1005 = vmatpush.bf16.msra.mxu0 %v918
      %1006 = vmatpush.bf16.msra.mxu0 %v916
      %1007 = vmatpush.bf16.msra.mxu0 %v914
      %1008 = vmatpush.bf16.msra.mxu0 %v912
      %1009 = vmatmul.bf16.gmra.mxu0 %v796
      %v1010 = vpop.f32.mrf.mxu0
      %v1011 = vadd.f32 %v997, %v1010
      %v1012 = vpop.f32.mrf.mxu0
      %v1013 = vadd.f32 %v999, %v1012
      %1014 = vdwg.mxu0
      %v1015 = vadd.f32 %v713, %v983
      %v1016 = vadd.f32 %v741, %v1011
      %v1017 = vadd.f32 %v715, %v985
      %v1018 = vadd.f32 %v743, %v1013
      %v1019 = vld [vmem:[%s2] sm:$0x3]
      %v1021 = vperm.slane %v1019, 0
      %v1022 = vperm.slane %v1019, 1
      %v1025 = vadd.f32 %v1015, %v1021
      %v1026 = vadd.f32 %v1016, %v1022
      %v1027 = vadd.f32 %v1017, %v1021
      %v1028 = vadd.f32 %v1018, %v1022
      %v1029 = vmax.f32 %v1025, 0.0
      %v1030 = vmax.f32 %v1026, 0.0
      %v1031 = vmax.f32 %v1027, 0.0
      %v1032 = vmax.f32 %v1028, 0.0
      %v1037 = vrot.slane %v1029, 7
      %v1038 = vrot.slane %v1030, 7
      %v1039 = vrot.slane %v1031, 7
      %v1040 = vsel %vm188, %v1037, %v1039
      %v1041 = vrot.slane %v1032, 7
      %v1042 = vsel %vm188, %v1038, %v1041
      %1049 = vst [vmem:[#allocation2] sm:$0xfe] %v1037
      %1050 = vst [vmem:[#allocation2 + $0x8] sm:$0xfe] %v1038
      %1051 = vst [vmem:[#allocation2 + $0x10] sm:$0xff] %v1040
      %1052 = vst [vmem:[#allocation2 + $0x18] sm:$0xff] %v1042
      %1053 = vst [vmem:[#allocation2 + $0x20] sm:$0x1] %v1039
      %1054 = vst [vmem:[#allocation2 + $0x28] sm:$0x1] %v1041
      %v1055 = vld [vmem:[#allocation2] sm:$0xff]
      %v1056 = vld [vmem:[#allocation2 + $0x8] sm:$0xff]
      %v1057 = vld [vmem:[#allocation2 + $0x10] sm:$0xff]
      %v1058 = vld [vmem:[#allocation2 + $0x18] sm:$0xff]
      %v1059 = vpack.c.bf16 %v1057, %v1055
      %v1060 = vpack.c.bf16 %v1058, %v1056
      %v1061 = vld [vmem:[%s1] sm:$0xff]
      %v1062 = vld [vmem:[%s1 + $0x8] sm:$0xff]
      %v1063 = vld [vmem:[%s1 + $0x10] sm:$0xff]
      %v1064 = vld [vmem:[%s1 + $0x18] sm:$0xff]
      %v1065 = vld [vmem:[%s1 + $0x20] sm:$0xff]
      %v1066 = vld [vmem:[%s1 + $0x28] sm:$0xff]
      %v1067 = vld [vmem:[%s1 + $0x30] sm:$0xff]
      %v1068 = vld [vmem:[%s1 + $0x38] sm:$0xff]
      %v1069 = vld [vmem:[%s1 + $0x40] sm:$0xff]
      %v1070 = vld [vmem:[%s1 + $0x48] sm:$0xff]
      %v1071 = vld [vmem:[%s1 + $0x50] sm:$0xff]
      %v1072 = vld [vmem:[%s1 + $0x58] sm:$0xff]
      %v1073 = vld [vmem:[%s1 + $0x60] sm:$0xff]
      %v1074 = vld [vmem:[%s1 + $0x68] sm:$0xff]
      %v1075 = vld [vmem:[%s1 + $0x70] sm:$0xff]
      %v1076 = vld [vmem:[%s1 + $0x78] sm:$0xff]
      %v1077 = vld [vmem:[%s1 + $0x80] sm:$0xff]
      %v1078 = vld [vmem:[%s1 + $0x88] sm:$0xff]
      %v1079 = vld [vmem:[%s1 + $0x90] sm:$0xff]
      %v1080 = vld [vmem:[%s1 + $0x98] sm:$0xff]
      %v1081 = vld [vmem:[%s1 + $0xa0] sm:$0xff]
      %v1082 = vld [vmem:[%s1 + $0xa8] sm:$0xff]
      %v1083 = vld [vmem:[%s1 + $0xb0] sm:$0xff]
      %v1084 = vld [vmem:[%s1 + $0xb8] sm:$0xff]
      %v1085 = vld [vmem:[%s1 + $0xc0] sm:$0xff]
      %v1086 = vld [vmem:[%s1 + $0xc8] sm:$0xff]
      %v1087 = vld [vmem:[%s1 + $0xd0] sm:$0xff]
      %v1088 = vld [vmem:[%s1 + $0xd8] sm:$0xff]
      %v1089 = vld [vmem:[%s1 + $0xe0] sm:$0xff]
      %v1090 = vld [vmem:[%s1 + $0xe8] sm:$0xff]
      %v1091 = vld [vmem:[%s1 + $0xf0] sm:$0xff]
      %v1092 = vld [vmem:[%s1 + $0xf8] sm:$0xff]
      %v1093 = vld [vmem:[#allocation2] sm:$0xfe]
      %v1094 = vld [vmem:[#allocation2 + $0x8] sm:$0xfe]
      %v1095 = vld [vmem:[#allocation2 + $0x20] sm:$0x1]
      %v1096 = vld [vmem:[#allocation2 + $0x28] sm:$0x1]
      %v1097 = vpack.c.bf16 %v1057, %v1093
      %v1098 = vpack.c.bf16 %v1058, %v1094
      %v1099 = vpack.c.bf16 %v1095, %v1095
      %v1100 = vpack.c.bf16 %v1096, %v1096
      %v1101 = vld [vmem:[%s253] sm:$0xff]
      %v1102 = vld [vmem:[%s253 + $0x8] sm:$0xff]
      %v1103 = vld [vmem:[%s253 + $0x10] sm:$0xff]
      %v1104 = vld [vmem:[%s253 + $0x18] sm:$0xff]
      %v1105 = vld [vmem:[%s253 + $0x20] sm:$0xff]
      %v1106 = vld [vmem:[%s253 + $0x28] sm:$0xff]
      %v1107 = vld [vmem:[%s253 + $0x30] sm:$0xff]
      %v1108 = vld [vmem:[%s253 + $0x38] sm:$0xff]
      %v1109 = vld [vmem:[%s253 + $0x40] sm:$0xff]
      %v1110 = vld [vmem:[%s253 + $0x48] sm:$0xff]
      %v1111 = vld [vmem:[%s253 + $0x50] sm:$0xff]
      %v1112 = vld [vmem:[%s253 + $0x58] sm:$0xff]
      %v1113 = vld [vmem:[%s253 + $0x60] sm:$0xff]
      %v1114 = vld [vmem:[%s253 + $0x68] sm:$0xff]
      %v1115 = vld [vmem:[%s253 + $0x70] sm:$0xff]
      %v1116 = vld [vmem:[%s253 + $0x78] sm:$0xff]
      %v1117 = vld [vmem:[%s253 + $0x80] sm:$0xff]
      %v1118 = vld [vmem:[%s253 + $0x88] sm:$0xff]
      %v1119 = vld [vmem:[%s253 + $0x90] sm:$0xff]
      %v1120 = vld [vmem:[%s253 + $0x98] sm:$0xff]
      %v1121 = vld [vmem:[%s253 + $0xa0] sm:$0xff]
      %v1122 = vld [vmem:[%s253 + $0xa8] sm:$0xff]
      %v1123 = vld [vmem:[%s253 + $0xb0] sm:$0xff]
      %v1124 = vld [vmem:[%s253 + $0xb8] sm:$0xff]
      %v1125 = vld [vmem:[%s253 + $0xc0] sm:$0xff]
      %v1126 = vld [vmem:[%s253 + $0xc8] sm:$0xff]
      %v1127 = vld [vmem:[%s253 + $0xd0] sm:$0xff]
      %v1128 = vld [vmem:[%s253 + $0xd8] sm:$0xff]
      %v1129 = vld [vmem:[%s253 + $0xe0] sm:$0xff]
      %v1130 = vld [vmem:[%s253 + $0xe8] sm:$0xff]
      %v1131 = vld [vmem:[%s253 + $0xf0] sm:$0xff]
      %v1132 = vld [vmem:[%s253 + $0xf8] sm:$0xff]
      %v1134 = vshrl.u32 %v1097, 16
      %v1136 = vshll.u32 %v1097, 16
      %v1138 = vrot.slane %v1136, 1
      %v1139 = vor.u32 %v1134, %v1138
      %v1141 = vshll.u32 %v1099, 16
      %v1143 = vrot.slane %v1141, 1
      %v1144 = vsel %vm286, %v1139, %v1143
      %v1146 = vshrl.u32 %v1098, 16
      %v1148 = vshll.u32 %v1098, 16
      %v1150 = vrot.slane %v1148, 1
      %v1151 = vor.u32 %v1146, %v1150
      %v1153 = vshll.u32 %v1100, 16
      %v1155 = vrot.slane %v1153, 1
      %v1156 = vsel %vm286, %v1151, %v1155
      %v1191 = vunpack.c.l.b16 %v1101
      %v1192 = vunpack.c.h.b16 %v1101
      %v1193 = vunpack.c.l.b16 %v1102
      %v1194 = vunpack.c.h.b16 %v1102
      %v1195 = vunpack.c.l.b16 %v1103
      %v1196 = vunpack.c.h.b16 %v1103
      %v1197 = vunpack.c.l.b16 %v1104
      %v1198 = vunpack.c.h.b16 %v1104
      %v1199 = vunpack.c.l.b16 %v1105
      %v1200 = vunpack.c.h.b16 %v1105
      %v1201 = vunpack.c.l.b16 %v1106
      %v1202 = vunpack.c.h.b16 %v1106
      %v1203 = vunpack.c.l.b16 %v1107
      %v1204 = vunpack.c.h.b16 %v1107
      %v1205 = vunpack.c.l.b16 %v1108
      %v1206 = vunpack.c.h.b16 %v1108
      %v1207 = vunpack.c.l.b16 %v1109
      %v1208 = vunpack.c.h.b16 %v1109
      %v1209 = vunpack.c.l.b16 %v1110
      %v1210 = vunpack.c.h.b16 %v1110
      %v1211 = vunpack.c.l.b16 %v1111
      %v1212 = vunpack.c.h.b16 %v1111
      %v1213 = vunpack.c.l.b16 %v1112
      %v1214 = vunpack.c.h.b16 %v1112
      %v1215 = vunpack.c.l.b16 %v1113
      %v1216 = vunpack.c.h.b16 %v1113
      %v1217 = vunpack.c.l.b16 %v1114
      %v1218 = vunpack.c.h.b16 %v1114
      %v1219 = vunpack.c.l.b16 %v1115
      %v1220 = vunpack.c.h.b16 %v1115
      %v1221 = vunpack.c.l.b16 %v1116
      %v1222 = vunpack.c.h.b16 %v1116
      %v1223 = vunpack.c.l.b16 %v1117
      %v1224 = vunpack.c.h.b16 %v1117
      %v1225 = vunpack.c.l.b16 %v1118
      %v1226 = vunpack.c.h.b16 %v1118
      %v1227 = vunpack.c.l.b16 %v1119
      %v1228 = vunpack.c.h.b16 %v1119
      %v1229 = vunpack.c.l.b16 %v1120
      %v1230 = vunpack.c.h.b16 %v1120
      %v1231 = vunpack.c.l.b16 %v1121
      %v1232 = vunpack.c.h.b16 %v1121
      %v1233 = vunpack.c.l.b16 %v1122
      %v1234 = vunpack.c.h.b16 %v1122
      %v1235 = vunpack.c.l.b16 %v1123
      %v1236 = vunpack.c.h.b16 %v1123
      %v1237 = vunpack.c.l.b16 %v1124
      %v1238 = vunpack.c.h.b16 %v1124
      %v1239 = vunpack.c.l.b16 %v1125
      %v1240 = vunpack.c.h.b16 %v1125
      %v1241 = vunpack.c.l.b16 %v1126
      %v1242 = vunpack.c.h.b16 %v1126
      %v1243 = vunpack.c.l.b16 %v1127
      %v1244 = vunpack.c.h.b16 %v1127
      %v1245 = vunpack.c.l.b16 %v1128
      %v1246 = vunpack.c.h.b16 %v1128
      %v1247 = vunpack.c.l.b16 %v1129
      %v1248 = vunpack.c.h.b16 %v1129
      %v1249 = vunpack.c.l.b16 %v1130
      %v1250 = vunpack.c.h.b16 %v1130
      %v1251 = vunpack.c.l.b16 %v1131
      %v1252 = vunpack.c.h.b16 %v1131
      %v1253 = vunpack.c.l.b16 %v1132
      %v1254 = vunpack.c.h.b16 %v1132
      %v1255 = vpack.c.b16 %v1193, %v1191
      %v1256 = vpack.c.b16 %v1194, %v1192
      %v1257 = vpack.c.b16 %v1197, %v1195
      %v1258 = vpack.c.b16 %v1198, %v1196
      %v1259 = vpack.c.b16 %v1201, %v1199
      %v1260 = vpack.c.b16 %v1202, %v1200
      %v1261 = vpack.c.b16 %v1205, %v1203
      %v1262 = vpack.c.b16 %v1206, %v1204
      %v1263 = vpack.c.b16 %v1209, %v1207
      %v1264 = vpack.c.b16 %v1210, %v1208
      %v1265 = vpack.c.b16 %v1213, %v1211
      %v1266 = vpack.c.b16 %v1214, %v1212
      %v1267 = vpack.c.b16 %v1217, %v1215
      %v1268 = vpack.c.b16 %v1218, %v1216
      %v1269 = vpack.c.b16 %v1221, %v1219
      %v1270 = vpack.c.b16 %v1222, %v1220
      %v1271 = vpack.c.b16 %v1225, %v1223
      %v1272 = vpack.c.b16 %v1226, %v1224
      %v1273 = vpack.c.b16 %v1229, %v1227
      %v1274 = vpack.c.b16 %v1230, %v1228
      %v1275 = vpack.c.b16 %v1233, %v1231
      %v1276 = vpack.c.b16 %v1234, %v1232
      %v1277 = vpack.c.b16 %v1237, %v1235
      %v1278 = vpack.c.b16 %v1238, %v1236
      %v1279 = vpack.c.b16 %v1241, %v1239
      %v1280 = vpack.c.b16 %v1242, %v1240
      %v1281 = vpack.c.b16 %v1245, %v1243
      %v1282 = vpack.c.b16 %v1246, %v1244
      %v1283 = vpack.c.b16 %v1249, %v1247
      %v1284 = vpack.c.b16 %v1250, %v1248
      %v1285 = vpack.c.b16 %v1253, %v1251
      %v1286 = vpack.c.b16 %v1254, %v1252
      %1319 = vmatpush.bf16.msra.mxu0 %v1269
      %1320 = vmatpush.bf16.msra.mxu0 %v1267
      %1321 = vmatpush.bf16.msra.mxu0 %v1265
      %1322 = vmatpush.bf16.msra.mxu0 %v1263
      %1323 = vmatpush.bf16.msra.mxu0 %v1261
      %1324 = vmatpush.bf16.msra.mxu0 %v1259
      %1325 = vmatpush.bf16.msra.mxu0 %v1257
      %1326 = vmatpush.bf16.msra.mxu0 %v1255
      %1327 = vmatmul.bf16.gmra.mxu0 %v1144
      %v1328 = vpop.f32.mrf.mxu0
      %v1329 = vadd.f32 0.0, %v1328
      %v1330 = vpop.f32.mrf.mxu0
      %v1331 = vadd.f32 0.0, %v1330
      %1332 = vdwg.mxu0
      %1333 = vmatpush.bf16.msra.mxu0 %v1285
      %1334 = vmatpush.bf16.msra.mxu0 %v1283
      %1335 = vmatpush.bf16.msra.mxu0 %v1281
      %1336 = vmatpush.bf16.msra.mxu0 %v1279
      %1337 = vmatpush.bf16.msra.mxu0 %v1277
      %1338 = vmatpush.bf16.msra.mxu0 %v1275
      %1339 = vmatpush.bf16.msra.mxu0 %v1273
      %1340 = vmatpush.bf16.msra.mxu0 %v1271
      %1341 = vmatmul.bf16.gmra.mxu0 %v1156
      %v1342 = vpop.f32.mrf.mxu0
      %v1343 = vadd.f32 %v1329, %v1342
      %v1344 = vpop.f32.mrf.mxu0
      %v1345 = vadd.f32 %v1331, %v1344
      %1346 = vdwg.mxu0
      %1347 = vmatpush.bf16.msra.mxu0 %v1270
      %1348 = vmatpush.bf16.msra.mxu0 %v1268
      %1349 = vmatpush.bf16.msra.mxu0 %v1266
      %1350 = vmatpush.bf16.msra.mxu0 %v1264
      %1351 = vmatpush.bf16.msra.mxu0 %v1262
      %1352 = vmatpush.bf16.msra.mxu0 %v1260
      %1353 = vmatpush.bf16.msra.mxu0 %v1258
      %1354 = vmatpush.bf16.msra.mxu0 %v1256
      %1355 = vmatmul.bf16.gmra.mxu0 %v1144
      %v1356 = vpop.f32.mrf.mxu0
      %v1357 = vadd.f32 0.0, %v1356
      %v1358 = vpop.f32.mrf.mxu0
      %v1359 = vadd.f32 0.0, %v1358
      %1360 = vdwg.mxu0
      %1361 = vmatpush.bf16.msra.mxu0 %v1286
      %1362 = vmatpush.bf16.msra.mxu0 %v1284
      %1363 = vmatpush.bf16.msra.mxu0 %v1282
      %1364 = vmatpush.bf16.msra.mxu0 %v1280
      %1365 = vmatpush.bf16.msra.mxu0 %v1278
      %1366 = vmatpush.bf16.msra.mxu0 %v1276
      %1367 = vmatpush.bf16.msra.mxu0 %v1274
      %1368 = vmatpush.bf16.msra.mxu0 %v1272
      %1369 = vmatmul.bf16.gmra.mxu0 %v1156
      %v1370 = vpop.f32.mrf.mxu0
      %v1371 = vadd.f32 %v1357, %v1370
      %v1372 = vpop.f32.mrf.mxu0
      %v1373 = vadd.f32 %v1359, %v1372
      %1374 = vdwg.mxu0
      %v1407 = vunpack.c.l.b16 %v1061
      %v1408 = vunpack.c.h.b16 %v1061
      %v1409 = vunpack.c.l.b16 %v1062
      %v1410 = vunpack.c.h.b16 %v1062
      %v1411 = vunpack.c.l.b16 %v1063
      %v1412 = vunpack.c.h.b16 %v1063
      %v1413 = vunpack.c.l.b16 %v1064
      %v1414 = vunpack.c.h.b16 %v1064
      %v1415 = vunpack.c.l.b16 %v1065
      %v1416 = vunpack.c.h.b16 %v1065
      %v1417 = vunpack.c.l.b16 %v1066
      %v1418 = vunpack.c.h.b16 %v1066
      %v1419 = vunpack.c.l.b16 %v1067
      %v1420 = vunpack.c.h.b16 %v1067
      %v1421 = vunpack.c.l.b16 %v1068
      %v1422 = vunpack.c.h.b16 %v1068
      %v1423 = vunpack.c.l.b16 %v1069
      %v1424 = vunpack.c.h.b16 %v1069
      %v1425 = vunpack.c.l.b16 %v1070
      %v1426 = vunpack.c.h.b16 %v1070
      %v1427 = vunpack.c.l.b16 %v1071
      %v1428 = vunpack.c.h.b16 %v1071
      %v1429 = vunpack.c.l.b16 %v1072
      %v1430 = vunpack.c.h.b16 %v1072
      %v1431 = vunpack.c.l.b16 %v1073
      %v1432 = vunpack.c.h.b16 %v1073
      %v1433 = vunpack.c.l.b16 %v1074
      %v1434 = vunpack.c.h.b16 %v1074
      %v1435 = vunpack.c.l.b16 %v1075
      %v1436 = vunpack.c.h.b16 %v1075
      %v1437 = vunpack.c.l.b16 %v1076
      %v1438 = vunpack.c.h.b16 %v1076
      %v1439 = vunpack.c.l.b16 %v1077
      %v1440 = vunpack.c.h.b16 %v1077
      %v1441 = vunpack.c.l.b16 %v1078
      %v1442 = vunpack.c.h.b16 %v1078
      %v1443 = vunpack.c.l.b16 %v1079
      %v1444 = vunpack.c.h.b16 %v1079
      %v1445 = vunpack.c.l.b16 %v1080
      %v1446 = vunpack.c.h.b16 %v1080
      %v1447 = vunpack.c.l.b16 %v1081
      %v1448 = vunpack.c.h.b16 %v1081
      %v1449 = vunpack.c.l.b16 %v1082
      %v1450 = vunpack.c.h.b16 %v1082
      %v1451 = vunpack.c.l.b16 %v1083
      %v1452 = vunpack.c.h.b16 %v1083
      %v1453 = vunpack.c.l.b16 %v1084
      %v1454 = vunpack.c.h.b16 %v1084
      %v1455 = vunpack.c.l.b16 %v1085
      %v1456 = vunpack.c.h.b16 %v1085
      %v1457 = vunpack.c.l.b16 %v1086
      %v1458 = vunpack.c.h.b16 %v1086
      %v1459 = vunpack.c.l.b16 %v1087
      %v1460 = vunpack.c.h.b16 %v1087
      %v1461 = vunpack.c.l.b16 %v1088
      %v1462 = vunpack.c.h.b16 %v1088
      %v1463 = vunpack.c.l.b16 %v1089
      %v1464 = vunpack.c.h.b16 %v1089
      %v1465 = vunpack.c.l.b16 %v1090
      %v1466 = vunpack.c.h.b16 %v1090
      %v1467 = vunpack.c.l.b16 %v1091
      %v1468 = vunpack.c.h.b16 %v1091
      %v1469 = vunpack.c.l.b16 %v1092
      %v1470 = vunpack.c.h.b16 %v1092
      %v1471 = vpack.c.b16 %v1409, %v1407
      %v1472 = vpack.c.b16 %v1410, %v1408
      %v1473 = vpack.c.b16 %v1413, %v1411
      %v1474 = vpack.c.b16 %v1414, %v1412
      %v1475 = vpack.c.b16 %v1417, %v1415
      %v1476 = vpack.c.b16 %v1418, %v1416
      %v1477 = vpack.c.b16 %v1421, %v1419
      %v1478 = vpack.c.b16 %v1422, %v1420
      %v1479 = vpack.c.b16 %v1425, %v1423
      %v1480 = vpack.c.b16 %v1426, %v1424
      %v1481 = vpack.c.b16 %v1429, %v1427
      %v1482 = vpack.c.b16 %v1430, %v1428
      %v1483 = vpack.c.b16 %v1433, %v1431
      %v1484 = vpack.c.b16 %v1434, %v1432
      %v1485 = vpack.c.b16 %v1437, %v1435
      %v1486 = vpack.c.b16 %v1438, %v1436
      %v1487 = vpack.c.b16 %v1441, %v1439
      %v1488 = vpack.c.b16 %v1442, %v1440
      %v1489 = vpack.c.b16 %v1445, %v1443
      %v1490 = vpack.c.b16 %v1446, %v1444
      %v1491 = vpack.c.b16 %v1449, %v1447
      %v1492 = vpack.c.b16 %v1450, %v1448
      %v1493 = vpack.c.b16 %v1453, %v1451
      %v1494 = vpack.c.b16 %v1454, %v1452
      %v1495 = vpack.c.b16 %v1457, %v1455
      %v1496 = vpack.c.b16 %v1458, %v1456
      %v1497 = vpack.c.b16 %v1461, %v1459
      %v1498 = vpack.c.b16 %v1462, %v1460
      %v1499 = vpack.c.b16 %v1465, %v1463
      %v1500 = vpack.c.b16 %v1466, %v1464
      %v1501 = vpack.c.b16 %v1469, %v1467
      %v1502 = vpack.c.b16 %v1470, %v1468
      %1535 = vmatpush.bf16.msra.mxu0 %v1485
      %1536 = vmatpush.bf16.msra.mxu0 %v1483
      %1537 = vmatpush.bf16.msra.mxu0 %v1481
      %1538 = vmatpush.bf16.msra.mxu0 %v1479
      %1539 = vmatpush.bf16.msra.mxu0 %v1477
      %1540 = vmatpush.bf16.msra.mxu0 %v1475
      %1541 = vmatpush.bf16.msra.mxu0 %v1473
      %1542 = vmatpush.bf16.msra.mxu0 %v1471
      %1543 = vmatmul.bf16.gmra.mxu0 %v1059
      %v1544 = vpop.f32.mrf.mxu0
      %v1545 = vadd.f32 %v1343, %v1544
      %v1546 = vpop.f32.mrf.mxu0
      %v1547 = vadd.f32 %v1345, %v1546
      %1548 = vdwg.mxu0
      %1549 = vmatpush.bf16.msra.mxu0 %v1501
      %1550 = vmatpush.bf16.msra.mxu0 %v1499
      %1551 = vmatpush.bf16.msra.mxu0 %v1497
      %1552 = vmatpush.bf16.msra.mxu0 %v1495
      %1553 = vmatpush.bf16.msra.mxu0 %v1493
      %1554 = vmatpush.bf16.msra.mxu0 %v1491
      %1555 = vmatpush.bf16.msra.mxu0 %v1489
      %1556 = vmatpush.bf16.msra.mxu0 %v1487
      %1557 = vmatmul.bf16.gmra.mxu0 %v1060
      %v1558 = vpop.f32.mrf.mxu0
      %v1559 = vadd.f32 %v1545, %v1558
      %v1560 = vpop.f32.mrf.mxu0
      %v1561 = vadd.f32 %v1547, %v1560
      %1562 = vdwg.mxu0
      %1563 = vmatpush.bf16.msra.mxu0 %v1486
      %1564 = vmatpush.bf16.msra.mxu0 %v1484
      %1565 = vmatpush.bf16.msra.mxu0 %v1482
      %1566 = vmatpush.bf16.msra.mxu0 %v1480
      %1567 = vmatpush.bf16.msra.mxu0 %v1478
      %1568 = vmatpush.bf16.msra.mxu0 %v1476
      %1569 = vmatpush.bf16.msra.mxu0 %v1474
      %1570 = vmatpush.bf16.msra.mxu0 %v1472
      %1571 = vmatmul.bf16.gmra.mxu0 %v1059
      %v1572 = vpop.f32.mrf.mxu0
      %v1573 = vadd.f32 %v1371, %v1572
      %v1574 = vpop.f32.mrf.mxu0
      %v1575 = vadd.f32 %v1373, %v1574
      %1576 = vdwg.mxu0
      %1577 = vmatpush.bf16.msra.mxu0 %v1502
      %1578 = vmatpush.bf16.msra.mxu0 %v1500
      %1579 = vmatpush.bf16.msra.mxu0 %v1498
      %1580 = vmatpush.bf16.msra.mxu0 %v1496
      %1581 = vmatpush.bf16.msra.mxu0 %v1494
      %1582 = vmatpush.bf16.msra.mxu0 %v1492
      %1583 = vmatpush.bf16.msra.mxu0 %v1490
      %1584 = vmatpush.bf16.msra.mxu0 %v1488
      %1585 = vmatmul.bf16.gmra.mxu0 %v1060
      %v1586 = vpop.f32.mrf.mxu0
      %v1587 = vadd.f32 %v1573, %v1586
      %v1588 = vpop.f32.mrf.mxu0
      %v1589 = vadd.f32 %v1575, %v1588
      %1590 = vdwg.mxu0
      %v1591 = vld [vmem:[#allocation2] sm:$0xfc]
      %v1592 = vld [vmem:[#allocation2 + $0x8] sm:$0xfc]
      %v1593 = vld [vmem:[#allocation2 + $0x20] sm:$0x3]
      %v1594 = vld [vmem:[#allocation2 + $0x28] sm:$0x3]
      %v1595 = vpack.c.bf16 %v1057, %v1591
      %v1596 = vpack.c.bf16 %v1058, %v1592
      %v1597 = vpack.c.bf16 %v1593, %v1593
      %v1598 = vpack.c.bf16 %v1594, %v1594
      %v1599 = vld [vmem:[%s753] sm:$0xff]
      %v1600 = vld [vmem:[%s753 + $0x8] sm:$0xff]
      %v1601 = vld [vmem:[%s753 + $0x10] sm:$0xff]
      %v1602 = vld [vmem:[%s753 + $0x18] sm:$0xff]
      %v1603 = vld [vmem:[%s753 + $0x20] sm:$0xff]
      %v1604 = vld [vmem:[%s753 + $0x28] sm:$0xff]
      %v1605 = vld [vmem:[%s753 + $0x30] sm:$0xff]
      %v1606 = vld [vmem:[%s753 + $0x38] sm:$0xff]
      %v1607 = vld [vmem:[%s753 + $0x40] sm:$0xff]
      %v1608 = vld [vmem:[%s753 + $0x48] sm:$0xff]
      %v1609 = vld [vmem:[%s753 + $0x50] sm:$0xff]
      %v1610 = vld [vmem:[%s753 + $0x58] sm:$0xff]
      %v1611 = vld [vmem:[%s753 + $0x60] sm:$0xff]
      %v1612 = vld [vmem:[%s753 + $0x68] sm:$0xff]
      %v1613 = vld [vmem:[%s753 + $0x70] sm:$0xff]
      %v1614 = vld [vmem:[%s753 + $0x78] sm:$0xff]
      %v1615 = vld [vmem:[%s753 + $0x80] sm:$0xff]
      %v1616 = vld [vmem:[%s753 + $0x88] sm:$0xff]
      %v1617 = vld [vmem:[%s753 + $0x90] sm:$0xff]
      %v1618 = vld [vmem:[%s753 + $0x98] sm:$0xff]
      %v1619 = vld [vmem:[%s753 + $0xa0] sm:$0xff]
      %v1620 = vld [vmem:[%s753 + $0xa8] sm:$0xff]
      %v1621 = vld [vmem:[%s753 + $0xb0] sm:$0xff]
      %v1622 = vld [vmem:[%s753 + $0xb8] sm:$0xff]
      %v1623 = vld [vmem:[%s753 + $0xc0] sm:$0xff]
      %v1624 = vld [vmem:[%s753 + $0xc8] sm:$0xff]
      %v1625 = vld [vmem:[%s753 + $0xd0] sm:$0xff]
      %v1626 = vld [vmem:[%s753 + $0xd8] sm:$0xff]
      %v1627 = vld [vmem:[%s753 + $0xe0] sm:$0xff]
      %v1628 = vld [vmem:[%s753 + $0xe8] sm:$0xff]
      %v1629 = vld [vmem:[%s753 + $0xf0] sm:$0xff]
      %v1630 = vld [vmem:[%s753 + $0xf8] sm:$0xff]
      %v1635 = vrot.slane %v1595, 1
      %v1636 = vrot.slane %v1597, 1
      %v1637 = vsel %vm790, %v1635, %v1636
      %v1638 = vrot.slane %v1596, 1
      %v1639 = vrot.slane %v1598, 1
      %v1640 = vsel %vm790, %v1638, %v1639
      %v1675 = vunpack.c.l.b16 %v1599
      %v1676 = vunpack.c.h.b16 %v1599
      %v1677 = vunpack.c.l.b16 %v1600
      %v1678 = vunpack.c.h.b16 %v1600
      %v1679 = vunpack.c.l.b16 %v1601
      %v1680 = vunpack.c.h.b16 %v1601
      %v1681 = vunpack.c.l.b16 %v1602
      %v1682 = vunpack.c.h.b16 %v1602
      %v1683 = vunpack.c.l.b16 %v1603
      %v1684 = vunpack.c.h.b16 %v1603
      %v1685 = vunpack.c.l.b16 %v1604
      %v1686 = vunpack.c.h.b16 %v1604
      %v1687 = vunpack.c.l.b16 %v1605
      %v1688 = vunpack.c.h.b16 %v1605
      %v1689 = vunpack.c.l.b16 %v1606
      %v1690 = vunpack.c.h.b16 %v1606
      %v1691 = vunpack.c.l.b16 %v1607
      %v1692 = vunpack.c.h.b16 %v1607
      %v1693 = vunpack.c.l.b16 %v1608
      %v1694 = vunpack.c.h.b16 %v1608
      %v1695 = vunpack.c.l.b16 %v1609
      %v1696 = vunpack.c.h.b16 %v1609
      %v1697 = vunpack.c.l.b16 %v1610
      %v1698 = vunpack.c.h.b16 %v1610
      %v1699 = vunpack.c.l.b16 %v1611
      %v1700 = vunpack.c.h.b16 %v1611
      %v1701 = vunpack.c.l.b16 %v1612
      %v1702 = vunpack.c.h.b16 %v1612
      %v1703 = vunpack.c.l.b16 %v1613
      %v1704 = vunpack.c.h.b16 %v1613
      %v1705 = vunpack.c.l.b16 %v1614
      %v1706 = vunpack.c.h.b16 %v1614
      %v1707 = vunpack.c.l.b16 %v1615
      %v1708 = vunpack.c.h.b16 %v1615
      %v1709 = vunpack.c.l.b16 %v1616
      %v1710 = vunpack.c.h.b16 %v1616
      %v1711 = vunpack.c.l.b16 %v1617
      %v1712 = vunpack.c.h.b16 %v1617
      %v1713 = vunpack.c.l.b16 %v1618
      %v1714 = vunpack.c.h.b16 %v1618
      %v1715 = vunpack.c.l.b16 %v1619
      %v1716 = vunpack.c.h.b16 %v1619
      %v1717 = vunpack.c.l.b16 %v1620
      %v1718 = vunpack.c.h.b16 %v1620
      %v1719 = vunpack.c.l.b16 %v1621
      %v1720 = vunpack.c.h.b16 %v1621
      %v1721 = vunpack.c.l.b16 %v1622
      %v1722 = vunpack.c.h.b16 %v1622
      %v1723 = vunpack.c.l.b16 %v1623
      %v1724 = vunpack.c.h.b16 %v1623
      %v1725 = vunpack.c.l.b16 %v1624
      %v1726 = vunpack.c.h.b16 %v1624
      %v1727 = vunpack.c.l.b16 %v1625
      %v1728 = vunpack.c.h.b16 %v1625
      %v1729 = vunpack.c.l.b16 %v1626
      %v1730 = vunpack.c.h.b16 %v1626
      %v1731 = vunpack.c.l.b16 %v1627
      %v1732 = vunpack.c.h.b16 %v1627
      %v1733 = vunpack.c.l.b16 %v1628
      %v1734 = vunpack.c.h.b16 %v1628
      %v1735 = vunpack.c.l.b16 %v1629
      %v1736 = vunpack.c.h.b16 %v1629
      %v1737 = vunpack.c.l.b16 %v1630
      %v1738 = vunpack.c.h.b16 %v1630
      %v1739 = vpack.c.b16 %v1677, %v1675
      %v1740 = vpack.c.b16 %v1678, %v1676
      %v1741 = vpack.c.b16 %v1681, %v1679
      %v1742 = vpack.c.b16 %v1682, %v1680
      %v1743 = vpack.c.b16 %v1685, %v1683
      %v1744 = vpack.c.b16 %v1686, %v1684
      %v1745 = vpack.c.b16 %v1689, %v1687
      %v1746 = vpack.c.b16 %v1690, %v1688
      %v1747 = vpack.c.b16 %v1693, %v1691
      %v1748 = vpack.c.b16 %v1694, %v1692
      %v1749 = vpack.c.b16 %v1697, %v1695
      %v1750 = vpack.c.b16 %v1698, %v1696
      %v1751 = vpack.c.b16 %v1701, %v1699
      %v1752 = vpack.c.b16 %v1702, %v1700
      %v1753 = vpack.c.b16 %v1705, %v1703
      %v1754 = vpack.c.b16 %v1706, %v1704
      %v1755 = vpack.c.b16 %v1709, %v1707
      %v1756 = vpack.c.b16 %v1710, %v1708
      %v1757 = vpack.c.b16 %v1713, %v1711
      %v1758 = vpack.c.b16 %v1714, %v1712
      %v1759 = vpack.c.b16 %v1717, %v1715
      %v1760 = vpack.c.b16 %v1718, %v1716
      %v1761 = vpack.c.b16 %v1721, %v1719
      %v1762 = vpack.c.b16 %v1722, %v1720
      %v1763 = vpack.c.b16 %v1725, %v1723
      %v1764 = vpack.c.b16 %v1726, %v1724
      %v1765 = vpack.c.b16 %v1729, %v1727
      %v1766 = vpack.c.b16 %v1730, %v1728
      %v1767 = vpack.c.b16 %v1733, %v1731
      %v1768 = vpack.c.b16 %v1734, %v1732
      %v1769 = vpack.c.b16 %v1737, %v1735
      %v1770 = vpack.c.b16 %v1738, %v1736
      %1803 = vmatpush.bf16.msra.mxu0 %v1753
      %1804 = vmatpush.bf16.msra.mxu0 %v1751
      %1805 = vmatpush.bf16.msra.mxu0 %v1749
      %1806 = vmatpush.bf16.msra.mxu0 %v1747
      %1807 = vmatpush.bf16.msra.mxu0 %v1745
      %1808 = vmatpush.bf16.msra.mxu0 %v1743
      %1809 = vmatpush.bf16.msra.mxu0 %v1741
      %1810 = vmatpush.bf16.msra.mxu0 %v1739
      %1811 = vmatmul.bf16.gmra.mxu0 %v1637
      %v1812 = vpop.f32.mrf.mxu0
      %v1813 = vadd.f32 0.0, %v1812
      %v1814 = vpop.f32.mrf.mxu0
      %v1815 = vadd.f32 0.0, %v1814
      %1816 = vdwg.mxu0
      %1817 = vmatpush.bf16.msra.mxu0 %v1769
      %1818 = vmatpush.bf16.msra.mxu0 %v1767
      %1819 = vmatpush.bf16.msra.mxu0 %v1765
      %1820 = vmatpush.bf16.msra.mxu0 %v1763
      %1821 = vmatpush.bf16.msra.mxu0 %v1761
      %1822 = vmatpush.bf16.msra.mxu0 %v1759
      %1823 = vmatpush.bf16.msra.mxu0 %v1757
      %1824 = vmatpush.bf16.msra.mxu0 %v1755
      %1825 = vmatmul.bf16.gmra.mxu0 %v1640
      %v1826 = vpop.f32.mrf.mxu0
      %v1827 = vadd.f32 %v1813, %v1826
      %v1828 = vpop.f32.mrf.mxu0
      %v1829 = vadd.f32 %v1815, %v1828
      %1830 = vdwg.mxu0
      %1831 = vmatpush.bf16.msra.mxu0 %v1754
      %1832 = vmatpush.bf16.msra.mxu0 %v1752
      %1833 = vmatpush.bf16.msra.mxu0 %v1750
      %1834 = vmatpush.bf16.msra.mxu0 %v1748
      %1835 = vmatpush.bf16.msra.mxu0 %v1746
      %1836 = vmatpush.bf16.msra.mxu0 %v1744
      %1837 = vmatpush.bf16.msra.mxu0 %v1742
      %1838 = vmatpush.bf16.msra.mxu0 %v1740
      %1839 = vmatmul.bf16.gmra.mxu0 %v1637
      %v1840 = vpop.f32.mrf.mxu0
      %v1841 = vadd.f32 0.0, %v1840
      %v1842 = vpop.f32.mrf.mxu0
      %v1843 = vadd.f32 0.0, %v1842
      %1844 = vdwg.mxu0
      %1845 = vmatpush.bf16.msra.mxu0 %v1770
      %1846 = vmatpush.bf16.msra.mxu0 %v1768
      %1847 = vmatpush.bf16.msra.mxu0 %v1766
      %1848 = vmatpush.bf16.msra.mxu0 %v1764
      %1849 = vmatpush.bf16.msra.mxu0 %v1762
      %1850 = vmatpush.bf16.msra.mxu0 %v1760
      %1851 = vmatpush.bf16.msra.mxu0 %v1758
      %1852 = vmatpush.bf16.msra.mxu0 %v1756
      %1853 = vmatmul.bf16.gmra.mxu0 %v1640
      %v1854 = vpop.f32.mrf.mxu0
      %v1855 = vadd.f32 %v1841, %v1854
      %v1856 = vpop.f32.mrf.mxu0
      %v1857 = vadd.f32 %v1843, %v1856
      %1858 = vdwg.mxu0
      %v1859 = vadd.f32 %v1559, %v1827
      %v1860 = vadd.f32 %v1587, %v1855
      %v1861 = vadd.f32 %v1561, %v1829
      %v1862 = vadd.f32 %v1589, %v1857
      %v1863 = vld [vmem:[%s2] sm:$0x3]
      %v1865 = vperm.slane %v1863, 0
      %v1866 = vperm.slane %v1863, 1
      %v1869 = vadd.f32 %v1859, %v1865
      %v1870 = vadd.f32 %v1860, %v1866
      %v1871 = vadd.f32 %v1861, %v1865
      %v1872 = vadd.f32 %v1862, %v1866
      %v1873 = vadd.f32 %v1869, %v171
      %v1874 = vadd.f32 %v1870, %v172
      %v1875 = vadd.f32 %v1871, %v173
      %v1876 = vadd.f32 %v1872, %v174
      %v1877 = vmax.f32 %v1873, 0.0
      %v1878 = vmax.f32 %v1874, 0.0
      %v1879 = vmax.f32 %v1875, 0.0
      %v1880 = vmax.f32 %v1876, 0.0
      %1881 = vst [vmem:[%s170] sm:$0xff] %v1877
      %1882 = vst [vmem:[%s170 + $0x8] sm:$0xff] %v1878
      %1883 = vst [vmem:[%s170 + $0x10] sm:$0xff] %v1879
      %1884 = vst [vmem:[%s170 + $0x18] sm:$0xff] %v1880
      %p1885 = scmp.lt.s32.totalorder %s14, 1
      %s1886 = scalar_select %p1885, %s14, 1
      %s1887 = smul.addr %s1886, 4
      %s1888 = smul.addr %s1887, 8
      %s1889 = scalar_lea.vmem %s3, %s1888
      // Predicated region
      $region33: #{resnet_block_forward.1} parent=31 // pred_check
        %p1890 = pneg %p100
      $region34: #{resnet_block_forward.1} parent=31 // pred_check_branch
        %1892 = sbr.rel (%p1890) target = $region36
      $region35: #{resnet_block_forward.1} parent=31 // pred_region
        _
      $region36: #{resnet_block_forward.1} parent=31 // pred_fallthru
        _
    $region32: #{resnet_block_forward.1} parent=5 // pred_fallthru
      _
    %p1893 = scmp.le.s32.totalorder 2, %s9
    // Predicated region
    $region37: #{resnet_block_forward.1} parent=5 // pred_check
      %p1894 = pneg %p1893
    $region38: #{resnet_block_forward.1} parent=5 // pred_check_branch
      %1896 = sbr.rel (%p1894) target = $region40
    $region39: #{resnet_block_forward.1} parent=5 // pred_region
      %s1897 = ssub.s32 %s9, 2
      // Predicated region
      $region41: #{resnet_block_forward.1} parent=39 // pred_check
        %p1898 = pneg %p106
      $region42: #{resnet_block_forward.1} parent=39 // pred_check_branch
        %1900 = sbr.rel (%p1898) target = $region44
      $region43: #{resnet_block_forward.1} parent=39 // pred_region
        %p1901 = scmp.lt.s32.totalorder %s15, 1
        %s1902 = scalar_select %p1901, %s15, 1
        %s1903 = smul.addr %s1902, 4
        %s1904 = smul.addr %s1903, 8
        %s1905 = scalar_lea.vmem %s3, %s1904
      $region44: #{resnet_block_forward.1} parent=39 // pred_fallthru
        _
    $region40: #{resnet_block_forward.1} parent=5 // pred_fallthru
      _
  $region6: #{resnet_block_forward.1} parent=0 // loop_footer
    %s13 = sadd.s32 1, %s9
  $region7: #{resnet_block_forward.1} parent=0 // loop_footer_branch
    %8 = sbr.rel target = $region3
  $region8: #{resnet_block_forward.1} parent=0 // loop_exit
    _

</llo_original>
